<compile_context>
chip_gen: v5e
topology: v5e:2x2
jax: 0.10.0
libtpu: 0.0.40
codegen_flags: <defaults>
</compile_context>

<pallas_src>
import jax
import jax.numpy as jnp
from jax import lax
from jax.experimental import pallas as pl
from jax.experimental.pallas import tpu as pltpu


# ----------------------------- Pallas kernel -------------------------------

def _conv3x3_s2_relu_kernel(x00_ref, x01_ref, x10_ref, x11_ref, w_ref, b_ref, o_ref):
    """One image: 3x3 / stride-2 / pad-1 conv + bias + ReLU.

    x{p}{q}_ref : (Ho+1, Wo+1, Cin) bf16 parity plane of the padded input,
                  x_pq[a, b, :] == x_padded[2a+p, 2b+q, :].
    w_ref       : (9*Cin, Cout) bf16, rows ordered (kh, kw, cin).
    b_ref       : (1, Cout) f32.
    o_ref       : (Ho, Wo, Cout) bf16 (layers 1-2) or f32 (final layer).
    """
    ho, wo, cout = o_ref.shape
    cin = x00_ref.shape[-1]
    planes = ((x00_ref, x01_ref), (x10_ref, x11_ref))

    # 9 taps, each a unit-stride static window of one parity plane:
    #   tap(kh, kw)[oh, ow, :] = x_padded[2*oh + kh, 2*ow + kw, :]
    cols = []
    for kh in range(3):
        for kw in range(3):
            src = planes[kh % 2][kw % 2]
            dh, dw = kh // 2, kw // 2
            cols.append(src[dh:dh + ho, dw:dw + wo, :])
    patches = jnp.concatenate(cols, axis=-1).reshape(ho * wo, 9 * cin)

    acc = jnp.dot(patches, w_ref[...], preferred_element_type=jnp.float32)  # MXU
    acc = jnp.maximum(acc + b_ref[...], 0.0)                                # f32 VPU epilogue
    o_ref[...] = acc.reshape(ho, wo, cout).astype(o_ref.dtype)


# ------------------------------ conv wrapper --------------------------------

def _parity_planes(x_nhwc):
    """Zero-pad by 1 and split into the four (h%2, w%2) parity planes (bf16)."""
    n, h, w, c = x_nhwc.shape
    ho = (h - 1) // 2 + 1
    wo = (w - 1) // 2 + 1
    # Pad to exactly 2*ho+2 rows / 2*wo+2 cols so every plane is (ho+1, wo+1);
    # the extra row/col (odd inputs only) is never read by a valid tap.
    xp = jnp.pad(x_nhwc, ((0, 0), (1, 2 * ho + 1 - h), (1, 2 * wo + 1 - w), (0, 0)))
    planes = tuple(xp[:, p::2, q::2, :] for p in (0, 1) for q in (0, 1))
    return planes, ho, wo


def conv3x3_s2_relu(x_nhwc, w2d, b2d, out_dtype):
    """x (N,H,W,Cin) -> (N,Ho,Wo,Cout); weight pre-packed as (9*Cin, Cout) bf16."""
    n = x_nhwc.shape[0]
    cin = x_nhwc.shape[-1]
    cout = w2d.shape[-1]
    planes, ho, wo = _parity_planes(x_nhwc.astype(jnp.bfloat16))
    hp2, wp2 = ho + 1, wo + 1

    plane_spec = pl.BlockSpec((None, hp2, wp2, cin), lambda i: (i, 0, 0, 0))
    return pl.pallas_call(
        _conv3x3_s2_relu_kernel,
        out_shape=jax.ShapeDtypeStruct((n, ho, wo, cout), out_dtype),
        grid=(n,),
        in_specs=[
            plane_spec, plane_spec, plane_spec, plane_spec,   # 4 parity planes
            pl.BlockSpec((9 * cin, cout), lambda i: (0, 0)),  # weights (resident)
            pl.BlockSpec((1, cout), lambda i: (0, 0)),        # bias (resident)
        ],
        out_specs=pl.BlockSpec((None, ho, wo, cout), lambda i: (i, 0, 0, 0)),
        compiler_params=pltpu.CompilerParams(
            dimension_semantics=("parallel",)),               # megacore shard on v7x
    )(*planes, w2d, b2d)


# --------------------------- FeatureExtractor --------------------------------

def init_params(key):
    """Deterministic parameter init matching the PyTorch module's shapes."""
    shapes = [
        (16, 3, 3, 3),    # conv1: (Cout, Cin, Kh, Kw)
        (32, 16, 3, 3),   # conv2
        (64, 32, 3, 3),   # conv3
    ]
    params = []
    for shp in shapes:
        key, kw_, kb_ = jax.random.split(key, 3)
        fan_in = shp[1] * shp[2] * shp[3]
        bound = 1.0 / float(fan_in) ** 0.5
        w = jax.random.uniform(kw_, shp, jnp.float32, -bound, bound)
        b = jax.random.uniform(kb_, (shp[0],), jnp.float32, -bound, bound)
        params.append((w, b))
    return params


def prepare_params(params):
    """PyTorch (Cout,Cin,3,3) -> (9*Cin, Cout) bf16 matmul weight + (1,Cout) f32 bias."""
    packed = []
    for (w, b) in params:
        cout, cin = int(w.shape[0]), int(w.shape[1])
        w2d = jnp.transpose(w, (2, 3, 1, 0)).reshape(9 * cin, cout).astype(jnp.bfloat16)
        b2d = b.astype(jnp.float32).reshape(1, cout)
        packed.append((w2d, b2d))
    return tuple(packed)


def make_feature_extractor():
    @jax.jit
    def fwd(x_nchw, packed):
        x = jnp.transpose(x_nchw, (0, 2, 3, 1))              # NCHW -> NHWC
        n_layers = len(packed)
        for i, (w2d, b2d) in enumerate(packed):
            out_dtype = jnp.float32 if i == n_layers - 1 else jnp.bfloat16
            x = conv3x3_s2_relu(x, w2d, b2d, out_dtype)
        return jnp.transpose(x, (0, 3, 1, 2))                # NHWC -> NCHW
    return fwd


# ------------------------------- references ----------------------------------

def feature_extractor_ref(x_nchw, params, match_kernel=False):
    """Pure-JAX reference.  match_kernel=True mirrors the kernel's bf16 casts."""
    x = x_nchw
    n_layers = len(params)
    for i, (w, b) in enumerate(params):
        xq = x.astype(jnp.bfloat16).astype(jnp.float32) if match_kernel else x
        wq = w.astype(jnp.bfloat16).astype(jnp.float32) if match_kernel else w
        y = lax.conv_general_dilated(
            xq, wq, window_strides=(2, 2), padding=((1, 1), (1, 1)),
            dimension_numbers=("NCHW", "OIHW", "NCHW"),
            preferred_element_type=jnp.float32)
        y = jnp.maximum(y + b[None, :, None, None], 0.0)
        if match_kernel and i < n_layers - 1:
            y = y.astype(jnp.bfloat16).astype(jnp.float32)   # kernel stores bf16 intermediates
        x = y
    return x


if __name__ == "__main__":
    key = jax.random.PRNGKey(0)
    key, kx = jax.random.split(key)
    x = jax.random.normal(kx, (2, 3, 16, 16), jnp.float32)   # NCHW, small shapes
    params = init_params(key)
    packed = prepare_params(params)
    fwd = make_feature_extractor()

    out = jax.block_until_ready(fwd(x, packed))
    assert out.shape == (2, 64, 2, 2), out.shape

    # Tight check vs a reference with matched bf16 input/weight/intermediate rounding.
    ref_q = jax.block_until_ready(feature_extractor_ref(x, params, match_kernel=True))
    assert jnp.allclose(out, ref_q, atol=5e-3, rtol=5e-3), (
        "mismatch vs bf16-matched reference: max|diff|=%f"
        % float(jnp.max(jnp.abs(out - ref_q))))
    # Loose sanity check vs the pure-f32 PyTorch-equivalent semantics.
    ref_f = jax.block_until_ready(feature_extractor_ref(x, params, match_kernel=False))
    assert jnp.allclose(out, ref_f, atol=5e-2, rtol=5e-2), "mismatch vs f32 reference"

    print("KERNEL_OK")
</pallas_src>

<mosaic_0001>
module attributes {stable_mosaic.version = 11 : i64} {
  func.func @_conv3x3_s2_relu_kernel(%arg0: i32, %arg1: memref<1x9x9x3xbf16, #tpu.memory_space<vmem>>, %arg2: memref<1x9x9x3xbf16, #tpu.memory_space<vmem>>, %arg3: memref<1x9x9x3xbf16, #tpu.memory_space<vmem>>, %arg4: memref<1x9x9x3xbf16, #tpu.memory_space<vmem>>, %arg5: memref<27x16xbf16, #tpu.memory_space<vmem>>, %arg6: memref<1x16xf32, #tpu.memory_space<vmem>>, %arg7: memref<1x8x8x16xbf16, #tpu.memory_space<vmem>>) attributes {dimension_semantics = [#tpu.dimension_semantics<parallel>], iteration_bounds = array<i64: 2>, scalar_prefetch = 0 : i64, scratch_operands = 0 : i64, tpu.core_type = #tpu.core_type<tc>, window_params = [{transform_indices = @transform_0, window_bounds = array<i64: 1, 9, 9, 3>}, {transform_indices = @transform_1, window_bounds = array<i64: 1, 9, 9, 3>}, {transform_indices = @transform_2, window_bounds = array<i64: 1, 9, 9, 3>}, {transform_indices = @transform_3, window_bounds = array<i64: 1, 9, 9, 3>}, {pipeline_mode = #tpu.pipeline_mode<synchronous>, transform_indices = @transform_4, window_bounds = array<i64: 27, 16>}, {pipeline_mode = #tpu.pipeline_mode<synchronous>, transform_indices = @transform_5, window_bounds = array<i64: 1, 16>}, {transform_indices = @transform_6, window_bounds = array<i64: 1, 8, 8, 16>}]} {
    %c0 = arith.constant 0 : index
    %c0_0 = arith.constant 0 : index
    %c0_1 = arith.constant 0 : index
    %c0_2 = arith.constant 0 : index
    %0 = vector.load %arg1[%c0, %c0_0, %c0_1, %c0_2] : memref<1x9x9x3xbf16, #tpu.memory_space<vmem>>, vector<1x8x8x3xbf16>
    %1 = vector.shape_cast %0 : vector<1x8x8x3xbf16> to vector<8x8x3xbf16>
    %c0_3 = arith.constant 0 : index
    %c0_4 = arith.constant 0 : index
    %c0_5 = arith.constant 0 : index
    %c0_6 = arith.constant 0 : index
    %2 = vector.load %arg2[%c0_3, %c0_4, %c0_5, %c0_6] : memref<1x9x9x3xbf16, #tpu.memory_space<vmem>>, vector<1x8x8x3xbf16>
    %3 = vector.shape_cast %2 : vector<1x8x8x3xbf16> to vector<8x8x3xbf16>
    %c0_7 = arith.constant 0 : index
    %c0_8 = arith.constant 0 : index
    %c1 = arith.constant 1 : index
    %c0_9 = arith.constant 0 : index
    %4 = vector.load %arg1[%c0_7, %c0_8, %c1, %c0_9] : memref<1x9x9x3xbf16, #tpu.memory_space<vmem>>, vector<1x8x8x3xbf16>
    %5 = vector.shape_cast %4 : vector<1x8x8x3xbf16> to vector<8x8x3xbf16>
    %c0_10 = arith.constant 0 : index
    %c0_11 = arith.constant 0 : index
    %c0_12 = arith.constant 0 : index
    %c0_13 = arith.constant 0 : index
    %6 = vector.load %arg3[%c0_10, %c0_11, %c0_12, %c0_13] : memref<1x9x9x3xbf16, #tpu.memory_space<vmem>>, vector<1x8x8x3xbf16>
    %7 = vector.shape_cast %6 : vector<1x8x8x3xbf16> to vector<8x8x3xbf16>
    %c0_14 = arith.constant 0 : index
    %c0_15 = arith.constant 0 : index
    %c0_16 = arith.constant 0 : index
    %c0_17 = arith.constant 0 : index
    %8 = vector.load %arg4[%c0_14, %c0_15, %c0_16, %c0_17] : memref<1x9x9x3xbf16, #tpu.memory_space<vmem>>, vector<1x8x8x3xbf16>
    %9 = vector.shape_cast %8 : vector<1x8x8x3xbf16> to vector<8x8x3xbf16>
    %c0_18 = arith.constant 0 : index
    %c0_19 = arith.constant 0 : index
    %c1_20 = arith.constant 1 : index
    %c0_21 = arith.constant 0 : index
    %10 = vector.load %arg3[%c0_18, %c0_19, %c1_20, %c0_21] : memref<1x9x9x3xbf16, #tpu.memory_space<vmem>>, vector<1x8x8x3xbf16>
    %11 = vector.shape_cast %10 : vector<1x8x8x3xbf16> to vector<8x8x3xbf16>
    %c0_22 = arith.constant 0 : index
    %c1_23 = arith.constant 1 : index
    %c0_24 = arith.constant 0 : index
    %c0_25 = arith.constant 0 : index
    %12 = vector.load %arg1[%c0_22, %c1_23, %c0_24, %c0_25] : memref<1x9x9x3xbf16, #tpu.memory_space<vmem>>, vector<1x8x8x3xbf16>
    %13 = vector.shape_cast %12 : vector<1x8x8x3xbf16> to vector<8x8x3xbf16>
    %c0_26 = arith.constant 0 : index
    %c1_27 = arith.constant 1 : index
    %c0_28 = arith.constant 0 : index
    %c0_29 = arith.constant 0 : index
    %14 = vector.load %arg2[%c0_26, %c1_27, %c0_28, %c0_29] : memref<1x9x9x3xbf16, #tpu.memory_space<vmem>>, vector<1x8x8x3xbf16>
    %15 = vector.shape_cast %14 : vector<1x8x8x3xbf16> to vector<8x8x3xbf16>
    %c0_30 = arith.constant 0 : index
    %c1_31 = arith.constant 1 : index
    %c1_32 = arith.constant 1 : index
    %c0_33 = arith.constant 0 : index
    %16 = vector.load %arg1[%c0_30, %c1_31, %c1_32, %c0_33] : memref<1x9x9x3xbf16, #tpu.memory_space<vmem>>, vector<1x8x8x3xbf16>
    %17 = vector.shape_cast %16 : vector<1x8x8x3xbf16> to vector<8x8x3xbf16>
    %18 = tpu.concatenate %1, %3, %5, %7, %9, %11, %13, %15, %17 in 2 : vector<8x8x3xbf16>, vector<8x8x3xbf16>, vector<8x8x3xbf16>, vector<8x8x3xbf16>, vector<8x8x3xbf16>, vector<8x8x3xbf16>, vector<8x8x3xbf16>, vector<8x8x3xbf16>, vector<8x8x3xbf16> -> vector<8x8x27xbf16>
    %19 = vector.shape_cast %18 : vector<8x8x27xbf16> to vector<64x27xbf16>
    %c0_34 = arith.constant 0 : index
    %c0_35 = arith.constant 0 : index
    %20 = vector.load %arg5[%c0_34, %c0_35] : memref<27x16xbf16, #tpu.memory_space<vmem>>, vector<27x16xbf16>
    %cst = arith.constant dense<0.000000e+00> : vector<64x16xf32>
    %21 = tpu.matmul %19, %20, %cst {dimension_numbers = #tpu.dot_dimension_numbers<[1], [0], [0], [1], [0, 0, 1, 1], [], []>} : vector<64x27xbf16>, vector<27x16xbf16>, vector<64x16xf32> -> vector<64x16xf32>
    %c0_36 = arith.constant 0 : index
    %c0_37 = arith.constant 0 : index
    %22 = vector.load %arg6[%c0_36, %c0_37] : memref<1x16xf32, #tpu.memory_space<vmem>>, vector<1x16xf32>
    %23 = vector.broadcast %22 : vector<1x16xf32> to vector<64x16xf32>
    %24 = arith.addf %21, %23 : vector<64x16xf32>
    %cst_38 = arith.constant 0.000000e+00 : f32
    %25 = vector.broadcast %cst_38 : f32 to vector<64x16xf32>
    %26 = arith.maximumf %24, %25 : vector<64x16xf32>
    %27 = vector.shape_cast %26 : vector<64x16xf32> to vector<8x8x16xf32>
    %28 = arith.truncf %27 : vector<8x8x16xf32> to vector<8x8x16xbf16>
    %c0_39 = arith.constant 0 : index
    %c0_40 = arith.constant 0 : index
    %c0_41 = arith.constant 0 : index
    %c0_42 = arith.constant 0 : index
    %29 = vector.load %arg7[%c0_39, %c0_40, %c0_41, %c0_42] : memref<1x8x8x16xbf16, #tpu.memory_space<vmem>>, vector<1x8x8x16xbf16>
    %30 = vector.shape_cast %29 : vector<1x8x8x16xbf16> to vector<8x8x16xbf16>
    %31 = vector.shape_cast %28 : vector<8x8x16xbf16> to vector<1x8x8x16xbf16>
    tpu.vector_store %arg7[%c0_39, %c0_40, %c0_41, %c0_42], %31 {strides = array<i32>} : memref<1x8x8x16xbf16, #tpu.memory_space<vmem>>, vector<1x8x8x16xbf16>,
    return
  }
  func.func @transform_0(%arg0: i32) -> (i32, i32, i32, i32) {
    %c0_i32 = arith.constant 0 : i32
    %c0_i32_0 = arith.constant 0 : i32
    %c0_i32_1 = arith.constant 0 : i32
    %c0_i32_2 = arith.constant 0 : i32
    return %arg0, %c0_i32, %c0_i32_0, %c0_i32_1 : i32, i32, i32, i32
  }
  func.func @transform_1(%arg0: i32) -> (i32, i32, i32, i32) {
    %c0_i32 = arith.constant 0 : i32
    %c0_i32_0 = arith.constant 0 : i32
    %c0_i32_1 = arith.constant 0 : i32
    %c0_i32_2 = arith.constant 0 : i32
    return %arg0, %c0_i32, %c0_i32_0, %c0_i32_1 : i32, i32, i32, i32
  }
  func.func @transform_2(%arg0: i32) -> (i32, i32, i32, i32) {
    %c0_i32 = arith.constant 0 : i32
    %c0_i32_0 = arith.constant 0 : i32
    %c0_i32_1 = arith.constant 0 : i32
    %c0_i32_2 = arith.constant 0 : i32
    return %arg0, %c0_i32, %c0_i32_0, %c0_i32_1 : i32, i32, i32, i32
  }
  func.func @transform_3(%arg0: i32) -> (i32, i32, i32, i32) {
    %c0_i32 = arith.constant 0 : i32
    %c0_i32_0 = arith.constant 0 : i32
    %c0_i32_1 = arith.constant 0 : i32
    %c0_i32_2 = arith.constant 0 : i32
    return %arg0, %c0_i32, %c0_i32_0, %c0_i32_1 : i32, i32, i32, i32
  }
  func.func @transform_4(%arg0: i32) -> (i32, i32) {
    %c0_i32 = arith.constant 0 : i32
    %c0_i32_0 = arith.constant 0 : i32
    %c0_i32_1 = arith.constant 0 : i32
    return %c0_i32, %c0_i32_0 : i32, i32
  }
  func.func @transform_5(%arg0: i32) -> (i32, i32) {
    %c0_i32 = arith.constant 0 : i32
    %c0_i32_0 = arith.constant 0 : i32
    %c0_i32_1 = arith.constant 0 : i32
    return %c0_i32, %c0_i32_0 : i32, i32
  }
  func.func @transform_6(%arg0: i32) -> (i32, i32, i32, i32) {
    %c0_i32 = arith.constant 0 : i32
    %c0_i32_0 = arith.constant 0 : i32
    %c0_i32_1 = arith.constant 0 : i32
    %c0_i32_2 = arith.constant 0 : i32
    return %arg0, %c0_i32, %c0_i32_0, %c0_i32_1 : i32, i32, i32, i32
  }
}

module attributes {stable_mosaic.version = 11 : i64} {
  func.func @_conv3x3_s2_relu_kernel(%arg0: i32, %arg1: memref<1x5x5x16xbf16, #tpu.memory_space<vmem>>, %arg2: memref<1x5x5x16xbf16, #tpu.memory_space<vmem>>, %arg3: memref<1x5x5x16xbf16, #tpu.memory_space<vmem>>, %arg4: memref<1x5x5x16xbf16, #tpu.memory_space<vmem>>, %arg5: memref<144x32xbf16, #tpu.memory_space<vmem>>, %arg6: memref<1x32xf32, #tpu.memory_space<vmem>>, %arg7: memref<1x4x4x32xbf16, #tpu.memory_space<vmem>>) attributes {dimension_semantics = [#tpu.dimension_semantics<parallel>], iteration_bounds = array<i64: 2>, scalar_prefetch = 0 : i64, scratch_operands = 0 : i64, tpu.core_type = #tpu.core_type<tc>, window_params = [{transform_indices = @transform_0, window_bounds = array<i64: 1, 5, 5, 16>}, {transform_indices = @transform_1, window_bounds = array<i64: 1, 5, 5, 16>}, {transform_indices = @transform_2, window_bounds = array<i64: 1, 5, 5, 16>}, {transform_indices = @transform_3, window_bounds = array<i64: 1, 5, 5, 16>}, {pipeline_mode = #tpu.pipeline_mode<synchronous>, transform_indices = @transform_4, window_bounds = array<i64: 144, 32>}, {pipeline_mode = #tpu.pipeline_mode<synchronous>, transform_indices = @transform_5, window_bounds = array<i64: 1, 32>}, {transform_indices = @transform_6, window_bounds = array<i64: 1, 4, 4, 32>}]} {
    %c0 = arith.constant 0 : index
    %c0_0 = arith.constant 0 : index
    %c0_1 = arith.constant 0 : index
    %c0_2 = arith.constant 0 : index
    %0 = vector.load %arg1[%c0, %c0_0, %c0_1, %c0_2] : memref<1x5x5x16xbf16, #tpu.memory_space<vmem>>, vector<1x4x4x16xbf16>
    %1 = vector.shape_cast %0 : vector<1x4x4x16xbf16> to vector<4x4x16xbf16>
    %c0_3 = arith.constant 0 : index
    %c0_4 = arith.constant 0 : index
    %c0_5 = arith.constant 0 : index
    %c0_6 = arith.constant 0 : index
    %2 = vector.load %arg2[%c0_3, %c0_4, %c0_5, %c0_6] : memref<1x5x5x16xbf16, #tpu.memory_space<vmem>>, vector<1x4x4x16xbf16>
    %3 = vector.shape_cast %2 : vector<1x4x4x16xbf16> to vector<4x4x16xbf16>
    %c0_7 = arith.constant 0 : index
    %c0_8 = arith.constant 0 : index
    %c1 = arith.constant 1 : index
    %c0_9 = arith.constant 0 : index
    %4 = vector.load %arg1[%c0_7, %c0_8, %c1, %c0_9] : memref<1x5x5x16xbf16, #tpu.memory_space<vmem>>, vector<1x4x4x16xbf16>
    %5 = vector.shape_cast %4 : vector<1x4x4x16xbf16> to vector<4x4x16xbf16>
    %c0_10 = arith.constant 0 : index
    %c0_11 = arith.constant 0 : index
    %c0_12 = arith.constant 0 : index
    %c0_13 = arith.constant 0 : index
    %6 = vector.load %arg3[%c0_10, %c0_11, %c0_12, %c0_13] : memref<1x5x5x16xbf16, #tpu.memory_space<vmem>>, vector<1x4x4x16xbf16>
    %7 = vector.shape_cast %6 : vector<1x4x4x16xbf16> to vector<4x4x16xbf16>
    %c0_14 = arith.constant 0 : index
    %c0_15 = arith.constant 0 : index
    %c0_16 = arith.constant 0 : index
    %c0_17 = arith.constant 0 : index
    %8 = vector.load %arg4[%c0_14, %c0_15, %c0_16, %c0_17] : memref<1x5x5x16xbf16, #tpu.memory_space<vmem>>, vector<1x4x4x16xbf16>
    %9 = vector.shape_cast %8 : vector<1x4x4x16xbf16> to vector<4x4x16xbf16>
    %c0_18 = arith.constant 0 : index
    %c0_19 = arith.constant 0 : index
    %c1_20 = arith.constant 1 : index
    %c0_21 = arith.constant 0 : index
    %10 = vector.load %arg3[%c0_18, %c0_19, %c1_20, %c0_21] : memref<1x5x5x16xbf16, #tpu.memory_space<vmem>>, vector<1x4x4x16xbf16>
    %11 = vector.shape_cast %10 : vector<1x4x4x16xbf16> to vector<4x4x16xbf16>
    %c0_22 = arith.constant 0 : index
    %c1_23 = arith.constant 1 : index
    %c0_24 = arith.constant 0 : index
    %c0_25 = arith.constant 0 : index
    %12 = vector.load %arg1[%c0_22, %c1_23, %c0_24, %c0_25] : memref<1x5x5x16xbf16, #tpu.memory_space<vmem>>, vector<1x4x4x16xbf16>
    %13 = vector.shape_cast %12 : vector<1x4x4x16xbf16> to vector<4x4x16xbf16>
    %c0_26 = arith.constant 0 : index
    %c1_27 = arith.constant 1 : index
    %c0_28 = arith.constant 0 : index
    %c0_29 = arith.constant 0 : index
    %14 = vector.load %arg2[%c0_26, %c1_27, %c0_28, %c0_29] : memref<1x5x5x16xbf16, #tpu.memory_space<vmem>>, vector<1x4x4x16xbf16>
    %15 = vector.shape_cast %14 : vector<1x4x4x16xbf16> to vector<4x4x16xbf16>
    %c0_30 = arith.constant 0 : index
    %c1_31 = arith.constant 1 : index
    %c1_32 = arith.constant 1 : index
    %c0_33 = arith.constant 0 : index
    %16 = vector.load %arg1[%c0_30, %c1_31, %c1_32, %c0_33] : memref<1x5x5x16xbf16, #tpu.memory_space<vmem>>, vector<1x4x4x16xbf16>
    %17 = vector.shape_cast %16 : vector<1x4x4x16xbf16> to vector<4x4x16xbf16>
    %18 = tpu.concatenate %1, %3, %5, %7, %9, %11, %13, %15, %17 in 2 : vector<4x4x16xbf16>, vector<4x4x16xbf16>, vector<4x4x16xbf16>, vector<4x4x16xbf16>, vector<4x4x16xbf16>, vector<4x4x16xbf16>, vector<4x4x16xbf16>, vector<4x4x16xbf16>, vector<4x4x16xbf16> -> vector<4x4x144xbf16>
    %19 = vector.shape_cast %18 : vector<4x4x144xbf16> to vector<16x144xbf16>
    %c0_34 = arith.constant 0 : index
    %c0_35 = arith.constant 0 : index
    %20 = vector.load %arg5[%c0_34, %c0_35] : memref<144x32xbf16, #tpu.memory_space<vmem>>, vector<144x32xbf16>
    %cst = arith.constant dense<0.000000e+00> : vector<16x32xf32>
    %21 = tpu.matmul %19, %20, %cst {dimension_numbers = #tpu.dot_dimension_numbers<[1], [0], [0], [1], [0, 0, 1, 1], [], []>} : vector<16x144xbf16>, vector<144x32xbf16>, vector<16x32xf32> -> vector<16x32xf32>
    %c0_36 = arith.constant 0 : index
    %c0_37 = arith.constant 0 : index
    %22 = vector.load %arg6[%c0_36, %c0_37] : memref<1x32xf32, #tpu.memory_space<vmem>>, vector<1x32xf32>
    %23 = vector.broadcast %22 : vector<1x32xf32> to vector<16x32xf32>
    %24 = arith.addf %21, %23 : vector<16x32xf32>
    %cst_38 = arith.constant 0.000000e+00 : f32
    %25 = vector.broadcast %cst_38 : f32 to vector<16x32xf32>
    %26 = arith.maximumf %24, %25 : vector<16x32xf32>
    %27 = vector.shape_cast %26 : vector<16x32xf32> to vector<4x4x32xf32>
    %28 = arith.truncf %27 : vector<4x4x32xf32> to vector<4x4x32xbf16>
    %c0_39 = arith.constant 0 : index
    %c0_40 = arith.constant 0 : index
    %c0_41 = arith.constant 0 : index
    %c0_42 = arith.constant 0 : index
    %29 = vector.load %arg7[%c0_39, %c0_40, %c0_41, %c0_42] : memref<1x4x4x32xbf16, #tpu.memory_space<vmem>>, vector<1x4x4x32xbf16>
    %30 = vector.shape_cast %29 : vector<1x4x4x32xbf16> to vector<4x4x32xbf16>
    %31 = vector.shape_cast %28 : vector<4x4x32xbf16> to vector<1x4x4x32xbf16>
    tpu.vector_store %arg7[%c0_39, %c0_40, %c0_41, %c0_42], %31 {strides = array<i32>} : memref<1x4x4x32xbf16, #tpu.memory_space<vmem>>, vector<1x4x4x32xbf16>,
    return
  }
  func.func @transform_0(%arg0: i32) -> (i32, i32, i32, i32) {
    %c0_i32 = arith.constant 0 : i32
    %c0_i32_0 = arith.constant 0 : i32
    %c0_i32_1 = arith.constant 0 : i32
    %c0_i32_2 = arith.constant 0 : i32
    return %arg0, %c0_i32, %c0_i32_0, %c0_i32_1 : i32, i32, i32, i32
  }
  func.func @transform_1(%arg0: i32) -> (i32, i32, i32, i32) {
    %c0_i32 = arith.constant 0 : i32
    %c0_i32_0 = arith.constant 0 : i32
    %c0_i32_1 = arith.constant 0 : i32
    %c0_i32_2 = arith.constant 0 : i32
    return %arg0, %c0_i32, %c0_i32_0, %c0_i32_1 : i32, i32, i32, i32
  }
  func.func @transform_2(%arg0: i32) -> (i32, i32, i32, i32) {
    %c0_i32 = arith.constant 0 : i32
    %c0_i32_0 = arith.constant 0 : i32
    %c0_i32_1 = arith.constant 0 : i32
    %c0_i32_2 = arith.constant 0 : i32
    return %arg0, %c0_i32, %c0_i32_0, %c0_i32_1 : i32, i32, i32, i32
  }
  func.func @transform_3(%arg0: i32) -> (i32, i32, i32, i32) {
    %c0_i32 = arith.constant 0 : i32
    %c0_i32_0 = arith.constant 0 : i32
    %c0_i32_1 = arith.constant 0 : i32
    %c0_i32_2 = arith.constant 0 : i32
    return %arg0, %c0_i32, %c0_i32_0, %c0_i32_1 : i32, i32, i32, i32
  }
  func.func @transform_4(%arg0: i32) -> (i32, i32) {
    %c0_i32 = arith.constant 0 : i32
    %c0_i32_0 = arith.constant 0 : i32
    %c0_i32_1 = arith.constant 0 : i32
    return %c0_i32, %c0_i32_0 : i32, i32
  }
  func.func @transform_5(%arg0: i32) -> (i32, i32) {
    %c0_i32 = arith.constant 0 : i32
    %c0_i32_0 = arith.constant 0 : i32
    %c0_i32_1 = arith.constant 0 : i32
    return %c0_i32, %c0_i32_0 : i32, i32
  }
  func.func @transform_6(%arg0: i32) -> (i32, i32, i32, i32) {
    %c0_i32 = arith.constant 0 : i32
    %c0_i32_0 = arith.constant 0 : i32
    %c0_i32_1 = arith.constant 0 : i32
    %c0_i32_2 = arith.constant 0 : i32
    return %arg0, %c0_i32, %c0_i32_0, %c0_i32_1 : i32, i32, i32, i32
  }
}

module attributes {stable_mosaic.version = 11 : i64} {
  func.func @_conv3x3_s2_relu_kernel(%arg0: i32, %arg1: memref<1x3x3x32xbf16, #tpu.memory_space<vmem>>, %arg2: memref<1x3x3x32xbf16, #tpu.memory_space<vmem>>, %arg3: memref<1x3x3x32xbf16, #tpu.memory_space<vmem>>, %arg4: memref<1x3x3x32xbf16, #tpu.memory_space<vmem>>, %arg5: memref<288x64xbf16, #tpu.memory_space<vmem>>, %arg6: memref<1x64xf32, #tpu.memory_space<vmem>>, %arg7: memref<1x2x2x64xf32, #tpu.memory_space<vmem>>) attributes {dimension_semantics = [#tpu.dimension_semantics<parallel>], iteration_bounds = array<i64: 2>, scalar_prefetch = 0 : i64, scratch_operands = 0 : i64, tpu.core_type = #tpu.core_type<tc>, window_params = [{transform_indices = @transform_0, window_bounds = array<i64: 1, 3, 3, 32>}, {transform_indices = @transform_1, window_bounds = array<i64: 1, 3, 3, 32>}, {transform_indices = @transform_2, window_bounds = array<i64: 1, 3, 3, 32>}, {transform_indices = @transform_3, window_bounds = array<i64: 1, 3, 3, 32>}, {pipeline_mode = #tpu.pipeline_mode<synchronous>, transform_indices = @transform_4, window_bounds = array<i64: 288, 64>}, {pipeline_mode = #tpu.pipeline_mode<synchronous>, transform_indices = @transform_5, window_bounds = array<i64: 1, 64>}, {transform_indices = @transform_6, window_bounds = array<i64: 1, 2, 2, 64>}]} {
    %c0 = arith.constant 0 : index
    %c0_0 = arith.constant 0 : index
    %c0_1 = arith.constant 0 : index
    %c0_2 = arith.constant 0 : index
    %0 = vector.load %arg1[%c0, %c0_0, %c0_1, %c0_2] : memref<1x3x3x32xbf16, #tpu.memory_space<vmem>>, vector<1x2x2x32xbf16>
    %1 = vector.shape_cast %0 : vector<1x2x2x32xbf16> to vector<2x2x32xbf16>
    %c0_3 = arith.constant 0 : index
    %c0_4 = arith.constant 0 : index
    %c0_5 = arith.constant 0 : index
    %c0_6 = arith.constant 0 : index
    %2 = vector.load %arg2[%c0_3, %c0_4, %c0_5, %c0_6] : memref<1x3x3x32xbf16, #tpu.memory_space<vmem>>, vector<1x2x2x32xbf16>
    %3 = vector.shape_cast %2 : vector<1x2x2x32xbf16> to vector<2x2x32xbf16>
    %c0_7 = arith.constant 0 : index
    %c0_8 = arith.constant 0 : index
    %c1 = arith.constant 1 : index
    %c0_9 = arith.constant 0 : index
    %4 = vector.load %arg1[%c0_7, %c0_8, %c1, %c0_9] : memref<1x3x3x32xbf16, #tpu.memory_space<vmem>>, vector<1x2x2x32xbf16>
    %5 = vector.shape_cast %4 : vector<1x2x2x32xbf16> to vector<2x2x32xbf16>
    %c0_10 = arith.constant 0 : index
    %c0_11 = arith.constant 0 : index
    %c0_12 = arith.constant 0 : index
    %c0_13 = arith.constant 0 : index
    %6 = vector.load %arg3[%c0_10, %c0_11, %c0_12, %c0_13] : memref<1x3x3x32xbf16, #tpu.memory_space<vmem>>, vector<1x2x2x32xbf16>
    %7 = vector.shape_cast %6 : vector<1x2x2x32xbf16> to vector<2x2x32xbf16>
    %c0_14 = arith.constant 0 : index
    %c0_15 = arith.constant 0 : index
    %c0_16 = arith.constant 0 : index
    %c0_17 = arith.constant 0 : index
    %8 = vector.load %arg4[%c0_14, %c0_15, %c0_16, %c0_17] : memref<1x3x3x32xbf16, #tpu.memory_space<vmem>>, vector<1x2x2x32xbf16>
    %9 = vector.shape_cast %8 : vector<1x2x2x32xbf16> to vector<2x2x32xbf16>
    %c0_18 = arith.constant 0 : index
    %c0_19 = arith.constant 0 : index
    %c1_20 = arith.constant 1 : index
    %c0_21 = arith.constant 0 : index
    %10 = vector.load %arg3[%c0_18, %c0_19, %c1_20, %c0_21] : memref<1x3x3x32xbf16, #tpu.memory_space<vmem>>, vector<1x2x2x32xbf16>
    %11 = vector.shape_cast %10 : vector<1x2x2x32xbf16> to vector<2x2x32xbf16>
    %c0_22 = arith.constant 0 : index
    %c1_23 = arith.constant 1 : index
    %c0_24 = arith.constant 0 : index
    %c0_25 = arith.constant 0 : index
    %12 = vector.load %arg1[%c0_22, %c1_23, %c0_24, %c0_25] : memref<1x3x3x32xbf16, #tpu.memory_space<vmem>>, vector<1x2x2x32xbf16>
    %13 = vector.shape_cast %12 : vector<1x2x2x32xbf16> to vector<2x2x32xbf16>
    %c0_26 = arith.constant 0 : index
    %c1_27 = arith.constant 1 : index
    %c0_28 = arith.constant 0 : index
    %c0_29 = arith.constant 0 : index
    %14 = vector.load %arg2[%c0_26, %c1_27, %c0_28, %c0_29] : memref<1x3x3x32xbf16, #tpu.memory_space<vmem>>, vector<1x2x2x32xbf16>
    %15 = vector.shape_cast %14 : vector<1x2x2x32xbf16> to vector<2x2x32xbf16>
    %c0_30 = arith.constant 0 : index
    %c1_31 = arith.constant 1 : index
    %c1_32 = arith.constant 1 : index
    %c0_33 = arith.constant 0 : index
    %16 = vector.load %arg1[%c0_30, %c1_31, %c1_32, %c0_33] : memref<1x3x3x32xbf16, #tpu.memory_space<vmem>>, vector<1x2x2x32xbf16>
    %17 = vector.shape_cast %16 : vector<1x2x2x32xbf16> to vector<2x2x32xbf16>
    %18 = tpu.concatenate %1, %3, %5, %7, %9, %11, %13, %15, %17 in 2 : vector<2x2x32xbf16>, vector<2x2x32xbf16>, vector<2x2x32xbf16>, vector<2x2x32xbf16>, vector<2x2x32xbf16>, vector<2x2x32xbf16>, vector<2x2x32xbf16>, vector<2x2x32xbf16>, vector<2x2x32xbf16> -> vector<2x2x288xbf16>
    %19 = vector.shape_cast %18 : vector<2x2x288xbf16> to vector<4x288xbf16>
    %c0_34 = arith.constant 0 : index
    %c0_35 = arith.constant 0 : index
    %20 = vector.load %arg5[%c0_34, %c0_35] : memref<288x64xbf16, #tpu.memory_space<vmem>>, vector<288x64xbf16>
    %cst = arith.constant dense<0.000000e+00> : vector<4x64xf32>
    %21 = tpu.matmul %19, %20, %cst {dimension_numbers = #tpu.dot_dimension_numbers<[1], [0], [0], [1], [0, 0, 1, 1], [], []>} : vector<4x288xbf16>, vector<288x64xbf16>, vector<4x64xf32> -> vector<4x64xf32>
    %c0_36 = arith.constant 0 : index
    %c0_37 = arith.constant 0 : index
    %22 = vector.load %arg6[%c0_36, %c0_37] : memref<1x64xf32, #tpu.memory_space<vmem>>, vector<1x64xf32>
    %23 = vector.broadcast %22 : vector<1x64xf32> to vector<4x64xf32>
    %24 = arith.addf %21, %23 : vector<4x64xf32>
    %cst_38 = arith.constant 0.000000e+00 : f32
    %25 = vector.broadcast %cst_38 : f32 to vector<4x64xf32>
    %26 = arith.maximumf %24, %25 : vector<4x64xf32>
    %27 = vector.shape_cast %26 : vector<4x64xf32> to vector<2x2x64xf32>
    %c0_39 = arith.constant 0 : index
    %c0_40 = arith.constant 0 : index
    %c0_41 = arith.constant 0 : index
    %c0_42 = arith.constant 0 : index
    %28 = vector.load %arg7[%c0_39, %c0_40, %c0_41, %c0_42] : memref<1x2x2x64xf32, #tpu.memory_space<vmem>>, vector<1x2x2x64xf32>
    %29 = vector.shape_cast %28 : vector<1x2x2x64xf32> to vector<2x2x64xf32>
    %30 = vector.shape_cast %27 : vector<2x2x64xf32> to vector<1x2x2x64xf32>
    tpu.vector_store %arg7[%c0_39, %c0_40, %c0_41, %c0_42], %30 {strides = array<i32>} : memref<1x2x2x64xf32, #tpu.memory_space<vmem>>, vector<1x2x2x64xf32>,
    return
  }
  func.func @transform_0(%arg0: i32) -> (i32, i32, i32, i32) {
    %c0_i32 = arith.constant 0 : i32
    %c0_i32_0 = arith.constant 0 : i32
    %c0_i32_1 = arith.constant 0 : i32
    %c0_i32_2 = arith.constant 0 : i32
    return %arg0, %c0_i32, %c0_i32_0, %c0_i32_1 : i32, i32, i32, i32
  }
  func.func @transform_1(%arg0: i32) -> (i32, i32, i32, i32) {
    %c0_i32 = arith.constant 0 : i32
    %c0_i32_0 = arith.constant 0 : i32
    %c0_i32_1 = arith.constant 0 : i32
    %c0_i32_2 = arith.constant 0 : i32
    return %arg0, %c0_i32, %c0_i32_0, %c0_i32_1 : i32, i32, i32, i32
  }
  func.func @transform_2(%arg0: i32) -> (i32, i32, i32, i32) {
    %c0_i32 = arith.constant 0 : i32
    %c0_i32_0 = arith.constant 0 : i32
    %c0_i32_1 = arith.constant 0 : i32
    %c0_i32_2 = arith.constant 0 : i32
    return %arg0, %c0_i32, %c0_i32_0, %c0_i32_1 : i32, i32, i32, i32
  }
  func.func @transform_3(%arg0: i32) -> (i32, i32, i32, i32) {
    %c0_i32 = arith.constant 0 : i32
    %c0_i32_0 = arith.constant 0 : i32
    %c0_i32_1 = arith.constant 0 : i32
    %c0_i32_2 = arith.constant 0 : i32
    return %arg0, %c0_i32, %c0_i32_0, %c0_i32_1 : i32, i32, i32, i32
  }
  func.func @transform_4(%arg0: i32) -> (i32, i32) {
    %c0_i32 = arith.constant 0 : i32
    %c0_i32_0 = arith.constant 0 : i32
    %c0_i32_1 = arith.constant 0 : i32
    return %c0_i32, %c0_i32_0 : i32, i32
  }
  func.func @transform_5(%arg0: i32) -> (i32, i32) {
    %c0_i32 = arith.constant 0 : i32
    %c0_i32_0 = arith.constant 0 : i32
    %c0_i32_1 = arith.constant 0 : i32
    return %c0_i32, %c0_i32_0 : i32, i32
  }
  func.func @transform_6(%arg0: i32) -> (i32, i32, i32, i32) {
    %c0_i32 = arith.constant 0 : i32
    %c0_i32_0 = arith.constant 0 : i32
    %c0_i32_1 = arith.constant 0 : i32
    %c0_i32_2 = arith.constant 0 : i32
    return %arg0, %c0_i32, %c0_i32_0, %c0_i32_1 : i32, i32, i32, i32
  }
}

</mosaic_0001>

<llo_original>
// kernel: fwd.4
$region0: #{fwd.4}
  #allocation0 [shape = 'u32[]', space=smem, size = 0x4, offset = 0x4, fixed_abs, tag = 'smem constant byte address 0x4 - core index']
  #allocation1 [shape = 'u32[72,128]{1,0:T(1,128)}', space=vmem, size = 0x9000, scoped, tag = 'internal scratch']
  %s0 = inlined_call_operand.vmem [shape: bf16[2,5,5,16], index: 0, kind: input, shape index: {}]
  %s1 = inlined_call_operand.vmem [shape: bf16[2,5,5,16], index: 1, kind: input, shape index: {}]
  %s2 = inlined_call_operand.vmem [shape: bf16[2,5,5,16], index: 2, kind: input, shape index: {}]
  %s3 = inlined_call_operand.vmem [shape: bf16[2,5,5,16], index: 3, kind: input, shape index: {}]
  %s4 = inlined_call_operand.vmem [shape: bf16[144,32], index: 4, kind: input, shape index: {}]
  %s5 = inlined_call_operand.vmem [shape: f32[1,32], index: 5, kind: input, shape index: {}]
  %s6 = inlined_call_operand.vmem [shape: bf16[2,4,4,32], index: 6, kind: output, shape index: {}]
  %s7 = sld [smem:[#allocation0]]
  $region57: #{fwd.4} parent=0
    _
  %s9 = ssub.s32 1, %s7
  %s10 = scalar_select 0, %s9, %s7
  loop: start=0, step=1, limit=4
  $region2: #{fwd.4} parent=0 // loop_pre_header
    _
  $region3: #{fwd.4} parent=0 // loop_header
    %s12 = sphi 0, %s16
    %p13 = scmp.ge.s32.totalorder %s12, 4
    %s22 = sphi 0, %s24
    %s25 = sphi 0, %s22
    %s26 = sphi 0, %s25
    %s42 = sphi 0, %s26
    %s48 = sphi 0, %s50
    %s51 = sphi 0, %s48
    %s52 = sphi 0, %s51
    %s68 = sphi 0, %s52
    %s74 = sphi 0, %s76
    %s77 = sphi 0, %s74
    %s78 = sphi 0, %s77
    %s94 = sphi 0, %s78
    %s100 = sphi 0, %s102
    %s103 = sphi 0, %s100
    %s104 = sphi 0, %s103
    %s120 = sphi 0, %s104
    %s124 = sphi 0, %s124
    %s126 = sphi 0, %s124
    %s127 = sphi 0, %s126
    %s141 = sphi 0, %s127
    %s145 = sphi 0, %s145
    %s147 = sphi 0, %s145
    %s148 = sphi 0, %s147
    %s162 = sphi 0, %s148
    %s168 = sphi 0, %s170
    %s171 = sphi 0, %s168
    %s172 = sphi 0, %s171
    %s188 = sphi 0, %s172
  $region4: #{fwd.4} parent=0 // loop_header_branch
    %15 = sbr.rel (%p13) target = $region8
  $region5: #{fwd.4} parent=0 // loop_body
    %s17 = ssub.s32 %s12, 1
    %s18 = ssub.s32 %s12, 2
    %s19 = sadd.s32 %s12, 1
    %s20 = ssub.s32 %s12, %s19
    %p21 = scmp.eq.s32.totalorder %s20, 0
    %s23 = sadd.s32 %s22, 1
    %s24 = scalar_select %p21, %s22, %s23
    %p27 = pneg %p21
    %p28 = scmp.eq.s32.totalorder %s12, 1
    %p29 = por %p27, %p28
    %p30 = scmp.ne.s32.totalorder %s22, %s25
    %p31 = scmp.eq.s32.totalorder %s12, 0
    %p32 = por %p30, %p31
    %p33 = scmp.ne.s32.totalorder %s22, %s25
    %p34 = scmp.eq.s32.totalorder %s17, 1
    %p35 = por %p33, %p34
    %p36 = scmp.ne.s32.totalorder %s25, %s26
    %p37 = scmp.eq.s32.totalorder %s17, 0
    %p38 = por %p36, %p37
    %p39 = scmp.ne.s32.totalorder %s25, %s26
    %p40 = scmp.eq.s32.totalorder %s18, 1
    %p41 = por %p39, %p40
    %p43 = scmp.ne.s32.totalorder %s26, %s42
    %p44 = scmp.eq.s32.totalorder %s18, 0
    %p45 = por %p43, %p44
    %s46 = ssub.s32 %s12, %s19
    %p47 = scmp.eq.s32.totalorder %s46, 0
    %s49 = sadd.s32 %s48, 1
    %s50 = scalar_select %p47, %s48, %s49
    %p53 = pneg %p47
    %p54 = scmp.eq.s32.totalorder %s12, 1
    %p55 = por %p53, %p54
    %p56 = scmp.ne.s32.totalorder %s48, %s51
    %p57 = scmp.eq.s32.totalorder %s12, 0
    %p58 = por %p56, %p57
    %p59 = scmp.ne.s32.totalorder %s48, %s51
    %p60 = scmp.eq.s32.totalorder %s17, 1
    %p61 = por %p59, %p60
    %p62 = scmp.ne.s32.totalorder %s51, %s52
    %p63 = scmp.eq.s32.totalorder %s17, 0
    %p64 = por %p62, %p63
    %p65 = scmp.ne.s32.totalorder %s51, %s52
    %p66 = scmp.eq.s32.totalorder %s18, 1
    %p67 = por %p65, %p66
    %p69 = scmp.ne.s32.totalorder %s52, %s68
    %p70 = scmp.eq.s32.totalorder %s18, 0
    %p71 = por %p69, %p70
    %s72 = ssub.s32 %s12, %s19
    %p73 = scmp.eq.s32.totalorder %s72, 0
    %s75 = sadd.s32 %s74, 1
    %s76 = scalar_select %p73, %s74, %s75
    %p79 = pneg %p73
    %p80 = scmp.eq.s32.totalorder %s12, 1
    %p81 = por %p79, %p80
    %p82 = scmp.ne.s32.totalorder %s74, %s77
    %p83 = scmp.eq.s32.totalorder %s12, 0
    %p84 = por %p82, %p83
    %p85 = scmp.ne.s32.totalorder %s74, %s77
    %p86 = scmp.eq.s32.totalorder %s17, 1
    %p87 = por %p85, %p86
    %p88 = scmp.ne.s32.totalorder %s77, %s78
    %p89 = scmp.eq.s32.totalorder %s17, 0
    %p90 = por %p88, %p89
    %p91 = scmp.ne.s32.totalorder %s77, %s78
    %p92 = scmp.eq.s32.totalorder %s18, 1
    %p93 = por %p91, %p92
    %p95 = scmp.ne.s32.totalorder %s78, %s94
    %p96 = scmp.eq.s32.totalorder %s18, 0
    %p97 = por %p95, %p96
    %s98 = ssub.s32 %s12, %s19
    %p99 = scmp.eq.s32.totalorder %s98, 0
    %s101 = sadd.s32 %s100, 1
    %s102 = scalar_select %p99, %s100, %s101
    %p105 = pneg %p99
    %p106 = scmp.eq.s32.totalorder %s12, 1
    %p107 = por %p105, %p106
    %p108 = scmp.ne.s32.totalorder %s100, %s103
    %p109 = scmp.eq.s32.totalorder %s12, 0
    %p110 = por %p108, %p109
    %p111 = scmp.ne.s32.totalorder %s100, %s103
    %p112 = scmp.eq.s32.totalorder %s17, 1
    %p113 = por %p111, %p112
    %p114 = scmp.ne.s32.totalorder %s103, %s104
    %p115 = scmp.eq.s32.totalorder %s17, 0
    %p116 = por %p114, %p115
    %p117 = scmp.ne.s32.totalorder %s103, %s104
    %p118 = scmp.eq.s32.totalorder %s18, 1
    %p119 = por %p117, %p118
    %p121 = scmp.ne.s32.totalorder %s104, %s120
    %p122 = scmp.eq.s32.totalorder %s18, 0
    %p123 = por %p121, %p122
    %s125 = sadd.s32 %s124, 1
    %p128 = scmp.eq.s32.totalorder %s12, 1
    %p129 = scmp.ne.s32.totalorder %s124, %s126
    %p130 = scmp.eq.s32.totalorder %s12, 0
    %p131 = por %p129, %p130
    %p132 = scmp.ne.s32.totalorder %s124, %s126
    %p133 = scmp.eq.s32.totalorder %s17, 1
    %p134 = por %p132, %p133
    %p135 = scmp.ne.s32.totalorder %s126, %s127
    %p136 = scmp.eq.s32.totalorder %s17, 0
    %p137 = por %p135, %p136
    %p138 = scmp.ne.s32.totalorder %s126, %s127
    %p139 = scmp.eq.s32.totalorder %s18, 1
    %p140 = por %p138, %p139
    %p142 = scmp.ne.s32.totalorder %s127, %s141
    %p143 = scmp.eq.s32.totalorder %s18, 0
    %p144 = por %p142, %p143
    %s146 = sadd.s32 %s145, 1
    %p149 = scmp.eq.s32.totalorder %s12, 1
    %p150 = scmp.ne.s32.totalorder %s145, %s147
    %p151 = scmp.eq.s32.totalorder %s12, 0
    %p152 = por %p150, %p151
    %p153 = scmp.ne.s32.totalorder %s145, %s147
    %p154 = scmp.eq.s32.totalorder %s17, 1
    %p155 = por %p153, %p154
    %p156 = scmp.ne.s32.totalorder %s147, %s148
    %p157 = scmp.eq.s32.totalorder %s17, 0
    %p158 = por %p156, %p157
    %p159 = scmp.ne.s32.totalorder %s147, %s148
    %p160 = scmp.eq.s32.totalorder %s18, 1
    %p161 = por %p159, %p160
    %p163 = scmp.ne.s32.totalorder %s148, %s162
    %p164 = scmp.eq.s32.totalorder %s18, 0
    %p165 = por %p163, %p164
    %s166 = ssub.s32 %s12, %s19
    %p167 = scmp.eq.s32.totalorder %s166, 0
    %s169 = sadd.s32 %s168, 1
    %s170 = scalar_select %p167, %s168, %s169
    %p173 = pneg %p167
    %p174 = scmp.eq.s32.totalorder %s12, 1
    %p175 = por %p173, %p174
    %p176 = scmp.ne.s32.totalorder %s168, %s171
    %p177 = scmp.eq.s32.totalorder %s12, 0
    %p178 = por %p176, %p177
    %p179 = scmp.ne.s32.totalorder %s168, %s171
    %p180 = scmp.eq.s32.totalorder %s17, 1
    %p181 = por %p179, %p180
    %p182 = scmp.ne.s32.totalorder %s171, %s172
    %p183 = scmp.eq.s32.totalorder %s17, 0
    %p184 = por %p182, %p183
    %p185 = scmp.ne.s32.totalorder %s171, %s172
    %p186 = scmp.eq.s32.totalorder %s18, 1
    %p187 = por %p185, %p186
    %p189 = scmp.ne.s32.totalorder %s172, %s188
    %p190 = scmp.eq.s32.totalorder %s18, 0
    %p191 = por %p189, %p190
    %p192 = scmp.le.s32.totalorder 1, %s12
    %p193 = scmp.lt.s32.totalorder %s12, 3
    %p194 = pnand %p192, %p193
    %p195 = pneg %p194
    // Predicated region
    $region9: #{fwd.4} parent=5 // pred_check
      _
    $region10: #{fwd.4} parent=5 // pred_check_branch
      %197 = sbr.rel (%p194) target = $region12
    $region11: #{fwd.4} parent=5 // pred_region
      %s198 = ssub.s32 %s12, 1
      // Predicated region
      $region13: #{fwd.4} parent=11 // pred_check
        %p199 = pneg %p137
      $region14: #{fwd.4} parent=11 // pred_check_branch
        %201 = sbr.rel (%p199) target = $region16
      $region15: #{fwd.4} parent=11 // pred_region
        _
      $region16: #{fwd.4} parent=11 // pred_fallthru
        _
      // Predicated region
      $region17: #{fwd.4} parent=11 // pred_check
        %p202 = pneg %p158
      $region18: #{fwd.4} parent=11 // pred_check_branch
        %204 = sbr.rel (%p202) target = $region20
      $region19: #{fwd.4} parent=11 // pred_region
        _
      $region20: #{fwd.4} parent=11 // pred_fallthru
        _
    $region12: #{fwd.4} parent=5 // pred_fallthru
      _
    %p205 = scmp.lt.s32.totalorder %s12, 2
    // Predicated region
    $region21: #{fwd.4} parent=5 // pred_check
      %p206 = pneg %p205
    $region22: #{fwd.4} parent=5 // pred_check_branch
      %208 = sbr.rel (%p206) target = $region24
    $region23: #{fwd.4} parent=5 // pred_region
      // Predicated region
      $region25: #{fwd.4} parent=23 // pred_check
        %p209 = pneg %p32
      $region26: #{fwd.4} parent=23 // pred_check_branch
        %211 = sbr.rel (%p209) target = $region28
      $region27: #{fwd.4} parent=23 // pred_region
        %p212 = scmp.lt.s32.totalorder %s12, 1
        %s213 = scalar_select %p212, %s12, 1
        %s214 = smul.addr %s213, 5
        %s215 = smul.addr %s214, 4
        %s216 = scalar_lea.vmem %s0, %s215
      $region28: #{fwd.4} parent=23 // pred_fallthru
        _
      // Predicated region
      $region29: #{fwd.4} parent=23 // pred_check
        %p217 = pneg %p58
      $region30: #{fwd.4} parent=23 // pred_check_branch
        %219 = sbr.rel (%p217) target = $region32
      $region31: #{fwd.4} parent=23 // pred_region
        %p220 = scmp.lt.s32.totalorder %s12, 1
        %s221 = scalar_select %p220, %s12, 1
        %s222 = smul.addr %s221, 5
        %s223 = smul.addr %s222, 4
        %s224 = scalar_lea.vmem %s1, %s223
      $region32: #{fwd.4} parent=23 // pred_fallthru
        _
      // Predicated region
      $region33: #{fwd.4} parent=23 // pred_check
        %p225 = pneg %p84
      $region34: #{fwd.4} parent=23 // pred_check_branch
        %227 = sbr.rel (%p225) target = $region36
      $region35: #{fwd.4} parent=23 // pred_region
        %p228 = scmp.lt.s32.totalorder %s12, 1
        %s229 = scalar_select %p228, %s12, 1
        %s230 = smul.addr %s229, 5
        %s231 = smul.addr %s230, 4
        %s232 = scalar_lea.vmem %s2, %s231
      $region36: #{fwd.4} parent=23 // pred_fallthru
        _
      // Predicated region
      $region37: #{fwd.4} parent=23 // pred_check
        %p233 = pneg %p110
      $region38: #{fwd.4} parent=23 // pred_check_branch
        %235 = sbr.rel (%p233) target = $region40
      $region39: #{fwd.4} parent=23 // pred_region
        %p236 = scmp.lt.s32.totalorder %s12, 1
        %s237 = scalar_select %p236, %s12, 1
        %s238 = smul.addr %s237, 5
        %s239 = smul.addr %s238, 4
        %s240 = scalar_lea.vmem %s3, %s239
      $region40: #{fwd.4} parent=23 // pred_fallthru
        _
    $region24: #{fwd.4} parent=5 // pred_fallthru
      _
    %p241 = scmp.le.s32.totalorder 1, %s12
    %p242 = scmp.lt.s32.totalorder %s12, 3
    %p243 = pnand %p241, %p242
    %p244 = pneg %p243
    // Predicated region
    $region41: #{fwd.4} parent=5 // pred_check
      _
    $region42: #{fwd.4} parent=5 // pred_check_branch
      %246 = sbr.rel (%p243) target = $region44
    $region43: #{fwd.4} parent=5 // pred_region
      %s247 = ssub.s32 %s12, 1
      %p248 = scmp.lt.s32.totalorder %s17, 1
      %s249 = scalar_select %p248, %s17, 1
      %s250 = smul.addr %s249, 5
      %s251 = smul.addr %s250, 4
      %s252 = scalar_lea.vmem %s0, %s251
      %p253 = pneg %p38
      %p254 = pneg %p35
      %p255 = scmp.lt.s32.totalorder %s17, 1
      %s256 = scalar_select %p255, %s17, 1
      %s257 = smul.addr %s256, 5
      %s258 = smul.addr %s257, 4
      %s259 = scalar_lea.vmem %s1, %s258
      %p260 = pneg %p64
      %p261 = pneg %p61
      %p262 = scmp.lt.s32.totalorder %s17, 1
      %s263 = scalar_select %p262, %s17, 1
      %s264 = smul.addr %s263, 5
      %s265 = smul.addr %s264, 4
      %s266 = scalar_lea.vmem %s2, %s265
      %p267 = pneg %p90
      %p268 = pneg %p87
      %p269 = scmp.lt.s32.totalorder %s17, 1
      %s270 = scalar_select %p269, %s17, 1
      %s271 = smul.addr %s270, 5
      %s272 = smul.addr %s271, 4
      %s273 = scalar_lea.vmem %s3, %s272
      %p274 = pneg %p116
      %p275 = pneg %p113
      %p276 = pneg %p137
      %p277 = pneg %p134
      %p278 = pneg %p158
      %p279 = pneg %p155
      %p280 = pneg %p184
      %p281 = pneg %p181
      %p282 = scmp.lt.s32.totalorder %s17, 1
      %s283 = scalar_select %p282, %s17, 1
      %s284 = smul.addr %s283, 4
      %s285 = smul.addr %s284, 2
      %s286 = scalar_lea.vmem %s6, %s285
      %p287 = scmp.lt.s32.totalorder %s17, 1
      %s288 = scalar_select %p287, %s17, 1
      %s289 = smul.addr %s288, 5
      %s290 = smul.addr %s289, 4
      %s291 = scalar_lea.vmem %s0, %s290
      %p292 = scmp.lt.s32.totalorder %s17, 1
      %s293 = scalar_select %p292, %s17, 1
      %s294 = smul.addr %s293, 5
      %s295 = smul.addr %s294, 4
      %s296 = scalar_lea.vmem %s1, %s295
      %p297 = scmp.lt.s32.totalorder %s17, 1
      %s298 = scalar_select %p297, %s17, 1
      %s299 = smul.addr %s298, 5
      %s300 = smul.addr %s299, 4
      %s301 = scalar_lea.vmem %s2, %s300
      %p302 = scmp.lt.s32.totalorder %s17, 1
      %s303 = scalar_select %p302, %s17, 1
      %s304 = smul.addr %s303, 5
      %s305 = smul.addr %s304, 4
      %s306 = scalar_lea.vmem %s3, %s305
      %p307 = scmp.lt.s32.totalorder %s17, 1
      %s308 = scalar_select %p307, %s17, 1
      %s309 = smul.addr %s308, 4
      %s310 = smul.addr %s309, 2
      %s311 = scalar_lea.vmem %s6, %s310
      %v313 = vld [vmem:[%s291] sm:$0x3]
      %v314 = vld [vmem:[%s291 + $0x4] sm:$0x3]
      %v315 = vld [vmem:[%s291 + $0x8] sm:$0x3]
      %v316 = vld [vmem:[%s291 + $0xc] sm:$0x3]
      %v317 = vld [vmem:[%s296] sm:$0x3]
      %v318 = vld [vmem:[%s296 + $0x4] sm:$0x3]
      %v319 = vld [vmem:[%s296 + $0x8] sm:$0x3]
      %v320 = vld [vmem:[%s296 + $0xc] sm:$0x3]
      %v321 = vld [vmem:[%s291] sm:$0x7]
      %v322 = vld [vmem:[%s291 + $0x4] sm:$0x7]
      %v323 = vld [vmem:[%s291 + $0x8] sm:$0x7]
      %v324 = vld [vmem:[%s291 + $0xc] sm:$0x7]
      %v325 = vld [vmem:[%s301] sm:$0x3]
      %v326 = vld [vmem:[%s301 + $0x4] sm:$0x3]
      %v327 = vld [vmem:[%s301 + $0x8] sm:$0x3]
      %v328 = vld [vmem:[%s301 + $0xc] sm:$0x3]
      %v329 = vld [vmem:[%s306] sm:$0x3]
      %v330 = vld [vmem:[%s306 + $0x4] sm:$0x3]
      %v331 = vld [vmem:[%s306 + $0x8] sm:$0x3]
      %v332 = vld [vmem:[%s306 + $0xc] sm:$0x3]
      %v333 = vld [vmem:[%s301] sm:$0x7]
      %v334 = vld [vmem:[%s301 + $0x4] sm:$0x7]
      %v335 = vld [vmem:[%s301 + $0x8] sm:$0x7]
      %v336 = vld [vmem:[%s301 + $0xc] sm:$0x7]
      %s337 = scalar_lea.vmem %s291, 4
      %v338 = vld [vmem:[%s337] sm:$0x3]
      %v339 = vld [vmem:[%s337 + $0x4] sm:$0x3]
      %v340 = vld [vmem:[%s337 + $0x8] sm:$0x3]
      %v341 = vld [vmem:[%s337 + $0xc] sm:$0x3]
      %s342 = scalar_lea.vmem %s296, 4
      %v343 = vld [vmem:[%s342] sm:$0x3]
      %v344 = vld [vmem:[%s342 + $0x4] sm:$0x3]
      %v345 = vld [vmem:[%s342 + $0x8] sm:$0x3]
      %v346 = vld [vmem:[%s342 + $0xc] sm:$0x3]
      %v347 = vld [vmem:[%s337] sm:$0x7]
      %v348 = vld [vmem:[%s337 + $0x4] sm:$0x7]
      %v349 = vld [vmem:[%s337 + $0x8] sm:$0x7]
      %v350 = vld [vmem:[%s337 + $0xc] sm:$0x7]
      %v355 = vunpack.c.l.b16 %v317
      %v356 = vunpack.c.l.b16 %v318
      %v357 = vunpack.c.l.b16 %v319
      %v358 = vunpack.c.l.b16 %v320
      %v359 = vpack.c.b16 %v355, %v355
      %v360 = vpack.c.b16 %v356, %v356
      %v361 = vpack.c.b16 %v357, %v357
      %v362 = vpack.c.b16 %v358, %v358
      %363 = vrot.lane.b32.xlu0 %v359, 16
      %v364 = vpop.permute.xlu0 %363
      %365 = vrot.lane.b32.xlu0 %v360, 16
      %v366 = vpop.permute.xlu0 %365
      %367 = vrot.lane.b32.xlu0 %v361, 16
      %v368 = vpop.permute.xlu0 %367
      %369 = vrot.lane.b32.xlu0 %v362, 16
      %v370 = vpop.permute.xlu0 %369
      %v375 = vunpack.c.l.b16 %v321
      %v376 = vunpack.c.l.b16 %v322
      %v377 = vunpack.c.l.b16 %v323
      %v378 = vunpack.c.l.b16 %v324
      %v379 = vpack.c.b16 %v375, %v375
      %v380 = vpack.c.b16 %v376, %v376
      %v381 = vpack.c.b16 %v377, %v377
      %v382 = vpack.c.b16 %v378, %v378
      %v384 = vshrl.u32 %v379, 16
      %v386 = vshll.u32 %v379, 16
      %v388 = vrot.slane %v386, 1
      %v389 = vor.u32 %v384, %v388
      %v391 = vshrl.u32 %v380, 16
      %v393 = vshll.u32 %v380, 16
      %v395 = vrot.slane %v393, 1
      %v396 = vor.u32 %v391, %v395
      %v398 = vshrl.u32 %v381, 16
      %v400 = vshll.u32 %v381, 16
      %v402 = vrot.slane %v400, 1
      %v403 = vor.u32 %v398, %v402
      %v405 = vshrl.u32 %v382, 16
      %v407 = vshll.u32 %v382, 16
      %v409 = vrot.slane %v407, 1
      %v410 = vor.u32 %v405, %v409
      %411 = vrot.lane.b32.xlu0 %v389, 32
      %v412 = vpop.permute.xlu0 %411
      %413 = vrot.lane.b32.xlu0 %v396, 32
      %v414 = vpop.permute.xlu0 %413
      %415 = vrot.lane.b32.xlu0 %v403, 32
      %v416 = vpop.permute.xlu0 %415
      %417 = vrot.lane.b32.xlu0 %v410, 32
      %v418 = vpop.permute.xlu0 %417
      %v423 = vunpack.c.l.b16 %v325
      %v424 = vunpack.c.l.b16 %v326
      %v425 = vunpack.c.l.b16 %v327
      %v426 = vunpack.c.l.b16 %v328
      %v427 = vpack.c.b16 %v423, %v423
      %v428 = vpack.c.b16 %v424, %v424
      %v429 = vpack.c.b16 %v425, %v425
      %v430 = vpack.c.b16 %v426, %v426
      %431 = vrot.lane.b32.xlu0 %v427, 48
      %v432 = vpop.permute.xlu0 %431
      %433 = vrot.lane.b32.xlu0 %v428, 48
      %v434 = vpop.permute.xlu0 %433
      %435 = vrot.lane.b32.xlu0 %v429, 48
      %v436 = vpop.permute.xlu0 %435
      %437 = vrot.lane.b32.xlu0 %v430, 48
      %v438 = vpop.permute.xlu0 %437
      %v443 = vunpack.c.l.b16 %v329
      %v444 = vunpack.c.l.b16 %v330
      %v445 = vunpack.c.l.b16 %v331
      %v446 = vunpack.c.l.b16 %v332
      %v447 = vpack.c.b16 %v443, %v443
      %v448 = vpack.c.b16 %v444, %v444
      %v449 = vpack.c.b16 %v445, %v445
      %v450 = vpack.c.b16 %v446, %v446
      %451 = vrot.lane.b32.xlu0 %v447, 64
      %v452 = vpop.permute.xlu0 %451
      %453 = vrot.lane.b32.xlu0 %v448, 64
      %v454 = vpop.permute.xlu0 %453
      %455 = vrot.lane.b32.xlu0 %v449, 64
      %v456 = vpop.permute.xlu0 %455
      %457 = vrot.lane.b32.xlu0 %v450, 64
      %v458 = vpop.permute.xlu0 %457
      %v463 = vunpack.c.l.b16 %v333
      %v464 = vunpack.c.l.b16 %v334
      %v465 = vunpack.c.l.b16 %v335
      %v466 = vunpack.c.l.b16 %v336
      %v467 = vpack.c.b16 %v463, %v463
      %v468 = vpack.c.b16 %v464, %v464
      %v469 = vpack.c.b16 %v465, %v465
      %v470 = vpack.c.b16 %v466, %v466
      %v472 = vshrl.u32 %v467, 16
      %v474 = vshll.u32 %v467, 16
      %v476 = vrot.slane %v474, 1
      %v477 = vor.u32 %v472, %v476
      %v479 = vshrl.u32 %v468, 16
      %v481 = vshll.u32 %v468, 16
      %v483 = vrot.slane %v481, 1
      %v484 = vor.u32 %v479, %v483
      %v486 = vshrl.u32 %v469, 16
      %v488 = vshll.u32 %v469, 16
      %v490 = vrot.slane %v488, 1
      %v491 = vor.u32 %v486, %v490
      %v493 = vshrl.u32 %v470, 16
      %v495 = vshll.u32 %v470, 16
      %v497 = vrot.slane %v495, 1
      %v498 = vor.u32 %v493, %v497
      %499 = vrot.lane.b32.xlu0 %v477, 80
      %v500 = vpop.permute.xlu0 %499
      %501 = vrot.lane.b32.xlu0 %v484, 80
      %v502 = vpop.permute.xlu0 %501
      %503 = vrot.lane.b32.xlu0 %v491, 80
      %v504 = vpop.permute.xlu0 %503
      %505 = vrot.lane.b32.xlu0 %v498, 80
      %v506 = vpop.permute.xlu0 %505
      %v511 = vunpack.c.l.b16 %v338
      %v512 = vunpack.c.l.b16 %v339
      %v513 = vunpack.c.l.b16 %v340
      %v514 = vunpack.c.l.b16 %v341
      %v515 = vpack.c.b16 %v511, %v511
      %v516 = vpack.c.b16 %v512, %v512
      %v517 = vpack.c.b16 %v513, %v513
      %v518 = vpack.c.b16 %v514, %v514
      %519 = vrot.lane.b32.xlu0 %v515, 96
      %v520 = vpop.permute.xlu0 %519
      %521 = vrot.lane.b32.xlu0 %v516, 96
      %v522 = vpop.permute.xlu0 %521
      %523 = vrot.lane.b32.xlu0 %v517, 96
      %v524 = vpop.permute.xlu0 %523
      %525 = vrot.lane.b32.xlu0 %v518, 96
      %v526 = vpop.permute.xlu0 %525
      %v531 = vunpack.c.l.b16 %v343
      %v532 = vunpack.c.l.b16 %v344
      %v533 = vunpack.c.l.b16 %v345
      %v534 = vunpack.c.l.b16 %v346
      %v535 = vpack.c.b16 %v531, %v531
      %v536 = vpack.c.b16 %v532, %v532
      %v537 = vpack.c.b16 %v533, %v533
      %v538 = vpack.c.b16 %v534, %v534
      %539 = vrot.lane.b32.xlu0 %v535, 112
      %v540 = vpop.permute.xlu0 %539
      %541 = vrot.lane.b32.xlu0 %v536, 112
      %v542 = vpop.permute.xlu0 %541
      %543 = vrot.lane.b32.xlu0 %v537, 112
      %v544 = vpop.permute.xlu0 %543
      %545 = vrot.lane.b32.xlu0 %v538, 112
      %v546 = vpop.permute.xlu0 %545
      %v551 = vunpack.c.l.b16 %v347
      %v552 = vunpack.c.l.b16 %v348
      %v553 = vunpack.c.l.b16 %v349
      %v554 = vunpack.c.l.b16 %v350
      %v555 = vpack.c.b16 %v551, %v551
      %v556 = vpack.c.b16 %v552, %v552
      %v557 = vpack.c.b16 %v553, %v553
      %v558 = vpack.c.b16 %v554, %v554
      %v560 = vshrl.u32 %v555, 16
      %v562 = vshll.u32 %v555, 16
      %v564 = vrot.slane %v562, 1
      %v565 = vor.u32 %v560, %v564
      %v567 = vshrl.u32 %v556, 16
      %v569 = vshll.u32 %v556, 16
      %v571 = vrot.slane %v569, 1
      %v572 = vor.u32 %v567, %v571
      %v574 = vshrl.u32 %v557, 16
      %v576 = vshll.u32 %v557, 16
      %v578 = vrot.slane %v576, 1
      %v579 = vor.u32 %v574, %v578
      %v581 = vshrl.u32 %v558, 16
      %v583 = vshll.u32 %v558, 16
      %v585 = vrot.slane %v583, 1
      %v586 = vor.u32 %v581, %v585
      %vm587 = vcmask 130048
      %v590 = vsel %vm587, %v313, %v364
      %v593 = vsel %vm587, %v314, %v366
      %v596 = vsel %vm587, %v315, %v368
      %v599 = vsel %vm587, %v316, %v370
      %vm600 = vcmask 261120
      %v602 = vsel %vm600, %v590, %v412
      %v604 = vsel %vm600, %v593, %v414
      %v606 = vsel %vm600, %v596, %v416
      %v608 = vsel %vm600, %v599, %v418
      %vm609 = vcmask 392192
      %v611 = vsel %vm609, %v602, %v432
      %v613 = vsel %vm609, %v604, %v434
      %v615 = vsel %vm609, %v606, %v436
      %v617 = vsel %vm609, %v608, %v438
      %vm618 = vcmask 523264
      %v620 = vsel %vm618, %v611, %v452
      %v622 = vsel %vm618, %v613, %v454
      %v624 = vsel %vm618, %v615, %v456
      %v626 = vsel %vm618, %v617, %v458
      %vm627 = vcmask 654336
      %v629 = vsel %vm627, %v620, %v500
      %v631 = vsel %vm627, %v622, %v502
      %v633 = vsel %vm627, %v624, %v504
      %v635 = vsel %vm627, %v626, %v506
      %vm636 = vcmask 785408
      %v638 = vsel %vm636, %v629, %v520
      %v640 = vsel %vm636, %v631, %v522
      %v642 = vsel %vm636, %v633, %v524
      %v644 = vsel %vm636, %v635, %v526
      %vm645 = vcmask 916480
      %v647 = vsel %vm645, %v638, %v540
      %v649 = vsel %vm645, %v640, %v542
      %v651 = vsel %vm645, %v642, %v544
      %v653 = vsel %vm645, %v644, %v546
      %v654 = vrot.slane %v565, 6
      %v655 = vrot.slane %v572, 6
      %v656 = vrot.slane %v579, 6
      %v657 = vrot.slane %v586, 6
      %vm658 = vcmask 1041408
      %v660 = vsel %vm658, %v647, %v654
      %v662 = vsel %vm658, %v649, %v655
      %v664 = vsel %vm658, %v651, %v656
      %v666 = vsel %vm658, %v653, %v657
      %v667 = vld [vmem:[%s4] sm:$0xf]
      %v668 = vld [vmem:[%s4 + $0x4] sm:$0xf]
      %v669 = vld [vmem:[%s4 + $0x8] sm:$0xf]
      %v670 = vld [vmem:[%s4 + $0xc] sm:$0xf]
      %v671 = vld [vmem:[%s4 + $0x10] sm:$0xf]
      %v672 = vld [vmem:[%s4 + $0x14] sm:$0xf]
      %v673 = vld [vmem:[%s4 + $0x18] sm:$0xf]
      %v674 = vld [vmem:[%s4 + $0x1c] sm:$0xf]
      %v675 = vld [vmem:[%s4 + $0x20] sm:$0xf]
      %v676 = vld [vmem:[%s4 + $0x24] sm:$0xf]
      %v677 = vld [vmem:[%s4 + $0x28] sm:$0xf]
      %v678 = vld [vmem:[%s4 + $0x2c] sm:$0xf]
      %v679 = vld [vmem:[%s4 + $0x30] sm:$0xf]
      %v680 = vld [vmem:[%s4 + $0x34] sm:$0xf]
      %v681 = vld [vmem:[%s4 + $0x38] sm:$0xf]
      %v682 = vld [vmem:[%s4 + $0x3c] sm:$0xf]
      %v683 = vld [vmem:[%s4 + $0x40] sm:$0xf]
      %v684 = vld [vmem:[%s4 + $0x44] sm:$0xf]
      %v685 = vld [vmem:[%s5] sm:$0x1]
      %v687 = vperm.slane %v685, 0
      %689 = vst [vmem:[#allocation1] ss:$4 sm:$0xff] %v660
      %s690 = scalar_lea.vmem [#allocation1], 1
      %691 = vst [vmem:[%s690] ss:$4 sm:$0xff] %v662
      %s692 = scalar_lea.vmem [#allocation1], 2
      %693 = vst [vmem:[%s692] ss:$4 sm:$0xff] %v664
      %s694 = scalar_lea.vmem [#allocation1], 3
      %695 = vst [vmem:[%s694] ss:$4 sm:$0xff] %v666
      %v696 = vld.sshfl [vmem:[#allocation1] sm:$0xff pattern:$0x73625140]
      %v697 = vld.sshfl [vmem:[#allocation1 + $0x8] sm:$0xff pattern:$0x73625140]
      %v717 = vunpack.c.l.b16 %v667
      %v718 = vunpack.c.l.b16 %v668
      %v719 = vunpack.c.l.b16 %v669
      %v720 = vunpack.c.l.b16 %v670
      %v721 = vunpack.c.l.b16 %v671
      %v722 = vunpack.c.l.b16 %v672
      %v723 = vunpack.c.l.b16 %v673
      %v724 = vunpack.c.l.b16 %v674
      %v725 = vunpack.c.l.b16 %v675
      %v726 = vunpack.c.l.b16 %v676
      %v727 = vunpack.c.l.b16 %v677
      %v728 = vunpack.c.l.b16 %v678
      %v729 = vunpack.c.l.b16 %v679
      %v730 = vunpack.c.l.b16 %v680
      %v731 = vunpack.c.l.b16 %v681
      %v732 = vunpack.c.l.b16 %v682
      %v733 = vunpack.c.l.b16 %v683
      %v734 = vunpack.c.l.b16 %v684
      %v735 = vpack.c.b16 %v718, %v717
      %v736 = vpack.c.b16 %v720, %v719
      %v737 = vpack.c.b16 %v722, %v721
      %v738 = vpack.c.b16 %v724, %v723
      %v739 = vpack.c.b16 %v726, %v725
      %v740 = vpack.c.b16 %v728, %v727
      %v741 = vpack.c.b16 %v730, %v729
      %v742 = vpack.c.b16 %v732, %v731
      %v743 = vpack.c.b16 %v734, %v733
      %v753 = vsel %vm587, %v697, 0
      %755 = vmatpush.bf16.msra.mxu0 %v742
      %756 = vmatpush.bf16.msra.mxu0 %v741
      %757 = vmatpush.bf16.msra.mxu0 %v740
      %758 = vmatpush.bf16.msra.mxu0 %v739
      %759 = vmatpush.bf16.msra.mxu0 %v738
      %760 = vmatpush.bf16.msra.mxu0 %v737
      %761 = vmatpush.bf16.msra.mxu0 %v736
      %762 = vmatpush.bf16.msra.mxu0 %v735
      %763 = vmatmul.bf16.gmra.mxu0 %v696
      %v764 = vpop.f32.mrf.mxu0
      %v765 = vadd.f32 %v687, %v764
      %v766 = vpop.f32.mrf.mxu0
      %v767 = vadd.f32 %v687, %v766
      %768 = vdwg.mxu0
      %769 = vmatpush.bf16.msra.mxu0 0
      %770 = vmatpush.bf16.msra.mxu0 0
      %771 = vmatpush.bf16.msra.mxu0 0
      %772 = vmatpush.bf16.msra.mxu0 0
      %773 = vmatpush.bf16.msra.mxu0 0
      %774 = vmatpush.bf16.msra.mxu0 0
      %775 = vmatpush.bf16.msra.mxu0 0
      %776 = vmatpush.bf16.msra.mxu0 %v743
      %777 = vmatmul.bf16.gmra.mxu0 %v753
      %v778 = vpop.f32.mrf.mxu0
      %v779 = vadd.f32 %v765, %v778
      %v780 = vpop.f32.mrf.mxu0
      %v781 = vadd.f32 %v767, %v780
      %782 = vdwg.mxu0
      %v783 = vmax.f32 %v779, 0.0
      %v784 = vmax.f32 %v781, 0.0
      %v787 = vrot.slane %v783, 4
      %v788 = vrot.slane %v784, 4
      %v791 = vpack.c.bf16 %v783, %v783
      %v792 = vpack.c.bf16 %v787, %v787
      %v793 = vpack.c.bf16 %v784, %v784
      %v794 = vpack.c.bf16 %v788, %v788
      %vm795 = vcmask 254976
      %796 = vst.msk [vmem:[%s311] sm:$0x3] %vm795, %v791
      %797 = vst.msk [vmem:[%s311 + $0x2] sm:$0x3] %vm795, %v792
      %798 = vst.msk [vmem:[%s311 + $0x4] sm:$0x3] %vm795, %v793
      %799 = vst.msk [vmem:[%s311 + $0x6] sm:$0x3] %vm795, %v794
      %p800 = scmp.lt.s32.totalorder %s17, 1
      %s801 = scalar_select %p800, %s17, 1
      %s802 = smul.addr %s801, 4
      %s803 = smul.addr %s802, 2
      %s804 = scalar_lea.vmem %s6, %s803
      // Predicated region
      $region45: #{fwd.4} parent=43 // pred_check
        %p805 = pneg %p181
      $region46: #{fwd.4} parent=43 // pred_check_branch
        %807 = sbr.rel (%p805) target = $region48
      $region47: #{fwd.4} parent=43 // pred_region
        _
      $region48: #{fwd.4} parent=43 // pred_fallthru
        _
    $region44: #{fwd.4} parent=5 // pred_fallthru
      _
    %p808 = scmp.le.s32.totalorder 2, %s12
    // Predicated region
    $region49: #{fwd.4} parent=5 // pred_check
      %p809 = pneg %p808
    $region50: #{fwd.4} parent=5 // pred_check_branch
      %811 = sbr.rel (%p809) target = $region52
    $region51: #{fwd.4} parent=5 // pred_region
      %s812 = ssub.s32 %s12, 2
      // Predicated region
      $region53: #{fwd.4} parent=51 // pred_check
        %p813 = pneg %p187
      $region54: #{fwd.4} parent=51 // pred_check_branch
        %815 = sbr.rel (%p813) target = $region56
      $region55: #{fwd.4} parent=51 // pred_region
        %p816 = scmp.lt.s32.totalorder %s18, 1
        %s817 = scalar_select %p816, %s18, 1
        %s818 = smul.addr %s817, 4
        %s819 = smul.addr %s818, 2
        %s820 = scalar_lea.vmem %s6, %s819
      $region56: #{fwd.4} parent=51 // pred_fallthru
        _
    $region52: #{fwd.4} parent=5 // pred_fallthru
      _
  $region6: #{fwd.4} parent=0 // loop_footer
    %s16 = sadd.s32 1, %s12
  $region7: #{fwd.4} parent=0 // loop_footer_branch
    %11 = sbr.rel target = $region3
  $region8: #{fwd.4} parent=0 // loop_exit
    _

// kernel: fwd.3
$region0: #{fwd.3}
  #allocation0 [shape = 'u32[]', space=smem, size = 0x4, offset = 0x4, fixed_abs, tag = 'smem constant byte address 0x4 - core index']
  #allocation1 [shape = 'u32[72,128]{1,0:T(1,128)}', space=vmem, size = 0x9000, scoped, tag = 'internal scratch']
  %s0 = inlined_call_operand.vmem [shape: bf16[2,9,9,3], index: 0, kind: input, shape index: {}]
  %s1 = inlined_call_operand.vmem [shape: bf16[2,9,9,3], index: 1, kind: input, shape index: {}]
  %s2 = inlined_call_operand.vmem [shape: bf16[2,9,9,3], index: 2, kind: input, shape index: {}]
  %s3 = inlined_call_operand.vmem [shape: bf16[2,9,9,3], index: 3, kind: input, shape index: {}]
  %s4 = inlined_call_operand.vmem [shape: bf16[27,16], index: 4, kind: input, shape index: {}]
  %s5 = inlined_call_operand.vmem [shape: f32[1,16], index: 5, kind: input, shape index: {}]
  %s6 = inlined_call_operand.vmem [shape: bf16[2,8,8,16], index: 6, kind: output, shape index: {}]
  %s7 = sld [smem:[#allocation0]]
  $region57: #{fwd.3} parent=0
    _
  %s9 = ssub.s32 1, %s7
  %s10 = scalar_select 0, %s9, %s7
  loop: start=0, step=1, limit=4
  $region2: #{fwd.3} parent=0 // loop_pre_header
    _
  $region3: #{fwd.3} parent=0 // loop_header
    %s12 = sphi 0, %s16
    %p13 = scmp.ge.s32.totalorder %s12, 4
    %s22 = sphi 0, %s24
    %s25 = sphi 0, %s22
    %s26 = sphi 0, %s25
    %s42 = sphi 0, %s26
    %s48 = sphi 0, %s50
    %s51 = sphi 0, %s48
    %s52 = sphi 0, %s51
    %s68 = sphi 0, %s52
    %s74 = sphi 0, %s76
    %s77 = sphi 0, %s74
    %s78 = sphi 0, %s77
    %s94 = sphi 0, %s78
    %s100 = sphi 0, %s102
    %s103 = sphi 0, %s100
    %s104 = sphi 0, %s103
    %s120 = sphi 0, %s104
    %s124 = sphi 0, %s124
    %s126 = sphi 0, %s124
    %s127 = sphi 0, %s126
    %s141 = sphi 0, %s127
    %s145 = sphi 0, %s145
    %s147 = sphi 0, %s145
    %s148 = sphi 0, %s147
    %s162 = sphi 0, %s148
    %s168 = sphi 0, %s170
    %s171 = sphi 0, %s168
    %s172 = sphi 0, %s171
    %s188 = sphi 0, %s172
  $region4: #{fwd.3} parent=0 // loop_header_branch
    %15 = sbr.rel (%p13) target = $region8
  $region5: #{fwd.3} parent=0 // loop_body
    %s17 = ssub.s32 %s12, 1
    %s18 = ssub.s32 %s12, 2
    %s19 = sadd.s32 %s12, 1
    %s20 = ssub.s32 %s12, %s19
    %p21 = scmp.eq.s32.totalorder %s20, 0
    %s23 = sadd.s32 %s22, 1
    %s24 = scalar_select %p21, %s22, %s23
    %p27 = pneg %p21
    %p28 = scmp.eq.s32.totalorder %s12, 1
    %p29 = por %p27, %p28
    %p30 = scmp.ne.s32.totalorder %s22, %s25
    %p31 = scmp.eq.s32.totalorder %s12, 0
    %p32 = por %p30, %p31
    %p33 = scmp.ne.s32.totalorder %s22, %s25
    %p34 = scmp.eq.s32.totalorder %s17, 1
    %p35 = por %p33, %p34
    %p36 = scmp.ne.s32.totalorder %s25, %s26
    %p37 = scmp.eq.s32.totalorder %s17, 0
    %p38 = por %p36, %p37
    %p39 = scmp.ne.s32.totalorder %s25, %s26
    %p40 = scmp.eq.s32.totalorder %s18, 1
    %p41 = por %p39, %p40
    %p43 = scmp.ne.s32.totalorder %s26, %s42
    %p44 = scmp.eq.s32.totalorder %s18, 0
    %p45 = por %p43, %p44
    %s46 = ssub.s32 %s12, %s19
    %p47 = scmp.eq.s32.totalorder %s46, 0
    %s49 = sadd.s32 %s48, 1
    %s50 = scalar_select %p47, %s48, %s49
    %p53 = pneg %p47
    %p54 = scmp.eq.s32.totalorder %s12, 1
    %p55 = por %p53, %p54
    %p56 = scmp.ne.s32.totalorder %s48, %s51
    %p57 = scmp.eq.s32.totalorder %s12, 0
    %p58 = por %p56, %p57
    %p59 = scmp.ne.s32.totalorder %s48, %s51
    %p60 = scmp.eq.s32.totalorder %s17, 1
    %p61 = por %p59, %p60
    %p62 = scmp.ne.s32.totalorder %s51, %s52
    %p63 = scmp.eq.s32.totalorder %s17, 0
    %p64 = por %p62, %p63
    %p65 = scmp.ne.s32.totalorder %s51, %s52
    %p66 = scmp.eq.s32.totalorder %s18, 1
    %p67 = por %p65, %p66
    %p69 = scmp.ne.s32.totalorder %s52, %s68
    %p70 = scmp.eq.s32.totalorder %s18, 0
    %p71 = por %p69, %p70
    %s72 = ssub.s32 %s12, %s19
    %p73 = scmp.eq.s32.totalorder %s72, 0
    %s75 = sadd.s32 %s74, 1
    %s76 = scalar_select %p73, %s74, %s75
    %p79 = pneg %p73
    %p80 = scmp.eq.s32.totalorder %s12, 1
    %p81 = por %p79, %p80
    %p82 = scmp.ne.s32.totalorder %s74, %s77
    %p83 = scmp.eq.s32.totalorder %s12, 0
    %p84 = por %p82, %p83
    %p85 = scmp.ne.s32.totalorder %s74, %s77
    %p86 = scmp.eq.s32.totalorder %s17, 1
    %p87 = por %p85, %p86
    %p88 = scmp.ne.s32.totalorder %s77, %s78
    %p89 = scmp.eq.s32.totalorder %s17, 0
    %p90 = por %p88, %p89
    %p91 = scmp.ne.s32.totalorder %s77, %s78
    %p92 = scmp.eq.s32.totalorder %s18, 1
    %p93 = por %p91, %p92
    %p95 = scmp.ne.s32.totalorder %s78, %s94
    %p96 = scmp.eq.s32.totalorder %s18, 0
    %p97 = por %p95, %p96
    %s98 = ssub.s32 %s12, %s19
    %p99 = scmp.eq.s32.totalorder %s98, 0
    %s101 = sadd.s32 %s100, 1
    %s102 = scalar_select %p99, %s100, %s101
    %p105 = pneg %p99
    %p106 = scmp.eq.s32.totalorder %s12, 1
    %p107 = por %p105, %p106
    %p108 = scmp.ne.s32.totalorder %s100, %s103
    %p109 = scmp.eq.s32.totalorder %s12, 0
    %p110 = por %p108, %p109
    %p111 = scmp.ne.s32.totalorder %s100, %s103
    %p112 = scmp.eq.s32.totalorder %s17, 1
    %p113 = por %p111, %p112
    %p114 = scmp.ne.s32.totalorder %s103, %s104
    %p115 = scmp.eq.s32.totalorder %s17, 0
    %p116 = por %p114, %p115
    %p117 = scmp.ne.s32.totalorder %s103, %s104
    %p118 = scmp.eq.s32.totalorder %s18, 1
    %p119 = por %p117, %p118
    %p121 = scmp.ne.s32.totalorder %s104, %s120
    %p122 = scmp.eq.s32.totalorder %s18, 0
    %p123 = por %p121, %p122
    %s125 = sadd.s32 %s124, 1
    %p128 = scmp.eq.s32.totalorder %s12, 1
    %p129 = scmp.ne.s32.totalorder %s124, %s126
    %p130 = scmp.eq.s32.totalorder %s12, 0
    %p131 = por %p129, %p130
    %p132 = scmp.ne.s32.totalorder %s124, %s126
    %p133 = scmp.eq.s32.totalorder %s17, 1
    %p134 = por %p132, %p133
    %p135 = scmp.ne.s32.totalorder %s126, %s127
    %p136 = scmp.eq.s32.totalorder %s17, 0
    %p137 = por %p135, %p136
    %p138 = scmp.ne.s32.totalorder %s126, %s127
    %p139 = scmp.eq.s32.totalorder %s18, 1
    %p140 = por %p138, %p139
    %p142 = scmp.ne.s32.totalorder %s127, %s141
    %p143 = scmp.eq.s32.totalorder %s18, 0
    %p144 = por %p142, %p143
    %s146 = sadd.s32 %s145, 1
    %p149 = scmp.eq.s32.totalorder %s12, 1
    %p150 = scmp.ne.s32.totalorder %s145, %s147
    %p151 = scmp.eq.s32.totalorder %s12, 0
    %p152 = por %p150, %p151
    %p153 = scmp.ne.s32.totalorder %s145, %s147
    %p154 = scmp.eq.s32.totalorder %s17, 1
    %p155 = por %p153, %p154
    %p156 = scmp.ne.s32.totalorder %s147, %s148
    %p157 = scmp.eq.s32.totalorder %s17, 0
    %p158 = por %p156, %p157
    %p159 = scmp.ne.s32.totalorder %s147, %s148
    %p160 = scmp.eq.s32.totalorder %s18, 1
    %p161 = por %p159, %p160
    %p163 = scmp.ne.s32.totalorder %s148, %s162
    %p164 = scmp.eq.s32.totalorder %s18, 0
    %p165 = por %p163, %p164
    %s166 = ssub.s32 %s12, %s19
    %p167 = scmp.eq.s32.totalorder %s166, 0
    %s169 = sadd.s32 %s168, 1
    %s170 = scalar_select %p167, %s168, %s169
    %p173 = pneg %p167
    %p174 = scmp.eq.s32.totalorder %s12, 1
    %p175 = por %p173, %p174
    %p176 = scmp.ne.s32.totalorder %s168, %s171
    %p177 = scmp.eq.s32.totalorder %s12, 0
    %p178 = por %p176, %p177
    %p179 = scmp.ne.s32.totalorder %s168, %s171
    %p180 = scmp.eq.s32.totalorder %s17, 1
    %p181 = por %p179, %p180
    %p182 = scmp.ne.s32.totalorder %s171, %s172
    %p183 = scmp.eq.s32.totalorder %s17, 0
    %p184 = por %p182, %p183
    %p185 = scmp.ne.s32.totalorder %s171, %s172
    %p186 = scmp.eq.s32.totalorder %s18, 1
    %p187 = por %p185, %p186
    %p189 = scmp.ne.s32.totalorder %s172, %s188
    %p190 = scmp.eq.s32.totalorder %s18, 0
    %p191 = por %p189, %p190
    %p192 = scmp.le.s32.totalorder 1, %s12
    %p193 = scmp.lt.s32.totalorder %s12, 3
    %p194 = pnand %p192, %p193
    %p195 = pneg %p194
    // Predicated region
    $region9: #{fwd.3} parent=5 // pred_check
      _
    $region10: #{fwd.3} parent=5 // pred_check_branch
      %197 = sbr.rel (%p194) target = $region12
    $region11: #{fwd.3} parent=5 // pred_region
      %s198 = ssub.s32 %s12, 1
      // Predicated region
      $region13: #{fwd.3} parent=11 // pred_check
        %p199 = pneg %p137
      $region14: #{fwd.3} parent=11 // pred_check_branch
        %201 = sbr.rel (%p199) target = $region16
      $region15: #{fwd.3} parent=11 // pred_region
        _
      $region16: #{fwd.3} parent=11 // pred_fallthru
        _
      // Predicated region
      $region17: #{fwd.3} parent=11 // pred_check
        %p202 = pneg %p158
      $region18: #{fwd.3} parent=11 // pred_check_branch
        %204 = sbr.rel (%p202) target = $region20
      $region19: #{fwd.3} parent=11 // pred_region
        _
      $region20: #{fwd.3} parent=11 // pred_fallthru
        _
    $region12: #{fwd.3} parent=5 // pred_fallthru
      _
    %p205 = scmp.lt.s32.totalorder %s12, 2
    // Predicated region
    $region21: #{fwd.3} parent=5 // pred_check
      %p206 = pneg %p205
    $region22: #{fwd.3} parent=5 // pred_check_branch
      %208 = sbr.rel (%p206) target = $region24
    $region23: #{fwd.3} parent=5 // pred_region
      // Predicated region
      $region25: #{fwd.3} parent=23 // pred_check
        %p209 = pneg %p32
      $region26: #{fwd.3} parent=23 // pred_check_branch
        %211 = sbr.rel (%p209) target = $region28
      $region27: #{fwd.3} parent=23 // pred_region
        %p212 = scmp.lt.s32.totalorder %s12, 1
        %s213 = scalar_select %p212, %s12, 1
        %s214 = smul.addr %s213, 18
        %s215 = smul.addr %s214, 4
        %s216 = scalar_lea.vmem %s0, %s215
      $region28: #{fwd.3} parent=23 // pred_fallthru
        _
      // Predicated region
      $region29: #{fwd.3} parent=23 // pred_check
        %p217 = pneg %p58
      $region30: #{fwd.3} parent=23 // pred_check_branch
        %219 = sbr.rel (%p217) target = $region32
      $region31: #{fwd.3} parent=23 // pred_region
        %p220 = scmp.lt.s32.totalorder %s12, 1
        %s221 = scalar_select %p220, %s12, 1
        %s222 = smul.addr %s221, 18
        %s223 = smul.addr %s222, 4
        %s224 = scalar_lea.vmem %s1, %s223
      $region32: #{fwd.3} parent=23 // pred_fallthru
        _
      // Predicated region
      $region33: #{fwd.3} parent=23 // pred_check
        %p225 = pneg %p84
      $region34: #{fwd.3} parent=23 // pred_check_branch
        %227 = sbr.rel (%p225) target = $region36
      $region35: #{fwd.3} parent=23 // pred_region
        %p228 = scmp.lt.s32.totalorder %s12, 1
        %s229 = scalar_select %p228, %s12, 1
        %s230 = smul.addr %s229, 18
        %s231 = smul.addr %s230, 4
        %s232 = scalar_lea.vmem %s2, %s231
      $region36: #{fwd.3} parent=23 // pred_fallthru
        _
      // Predicated region
      $region37: #{fwd.3} parent=23 // pred_check
        %p233 = pneg %p110
      $region38: #{fwd.3} parent=23 // pred_check_branch
        %235 = sbr.rel (%p233) target = $region40
      $region39: #{fwd.3} parent=23 // pred_region
        %p236 = scmp.lt.s32.totalorder %s12, 1
        %s237 = scalar_select %p236, %s12, 1
        %s238 = smul.addr %s237, 18
        %s239 = smul.addr %s238, 4
        %s240 = scalar_lea.vmem %s3, %s239
      $region40: #{fwd.3} parent=23 // pred_fallthru
        _
    $region24: #{fwd.3} parent=5 // pred_fallthru
      _
    %p241 = scmp.le.s32.totalorder 1, %s12
    %p242 = scmp.lt.s32.totalorder %s12, 3
    %p243 = pnand %p241, %p242
    %p244 = pneg %p243
    // Predicated region
    $region41: #{fwd.3} parent=5 // pred_check
      _
    $region42: #{fwd.3} parent=5 // pred_check_branch
      %246 = sbr.rel (%p243) target = $region44
    $region43: #{fwd.3} parent=5 // pred_region
      %s247 = ssub.s32 %s12, 1
      %p248 = scmp.lt.s32.totalorder %s17, 1
      %s249 = scalar_select %p248, %s17, 1
      %s250 = smul.addr %s249, 18
      %s251 = smul.addr %s250, 4
      %s252 = scalar_lea.vmem %s0, %s251
      %p253 = pneg %p38
      %p254 = pneg %p35
      %p255 = scmp.lt.s32.totalorder %s17, 1
      %s256 = scalar_select %p255, %s17, 1
      %s257 = smul.addr %s256, 18
      %s258 = smul.addr %s257, 4
      %s259 = scalar_lea.vmem %s1, %s258
      %p260 = pneg %p64
      %p261 = pneg %p61
      %p262 = scmp.lt.s32.totalorder %s17, 1
      %s263 = scalar_select %p262, %s17, 1
      %s264 = smul.addr %s263, 18
      %s265 = smul.addr %s264, 4
      %s266 = scalar_lea.vmem %s2, %s265
      %p267 = pneg %p90
      %p268 = pneg %p87
      %p269 = scmp.lt.s32.totalorder %s17, 1
      %s270 = scalar_select %p269, %s17, 1
      %s271 = smul.addr %s270, 18
      %s272 = smul.addr %s271, 4
      %s273 = scalar_lea.vmem %s3, %s272
      %p274 = pneg %p116
      %p275 = pneg %p113
      %p276 = pneg %p137
      %p277 = pneg %p134
      %p278 = pneg %p158
      %p279 = pneg %p155
      %p280 = pneg %p184
      %p281 = pneg %p181
      %p282 = scmp.lt.s32.totalorder %s17, 1
      %s283 = scalar_select %p282, %s17, 1
      %s284 = smul.addr %s283, 8
      %s285 = smul.addr %s284, 4
      %s286 = scalar_lea.vmem %s6, %s285
      %p287 = scmp.lt.s32.totalorder %s17, 1
      %s288 = scalar_select %p287, %s17, 1
      %s289 = smul.addr %s288, 18
      %s290 = smul.addr %s289, 4
      %s291 = scalar_lea.vmem %s0, %s290
      %p292 = scmp.lt.s32.totalorder %s17, 1
      %s293 = scalar_select %p292, %s17, 1
      %s294 = smul.addr %s293, 18
      %s295 = smul.addr %s294, 4
      %s296 = scalar_lea.vmem %s1, %s295
      %p297 = scmp.lt.s32.totalorder %s17, 1
      %s298 = scalar_select %p297, %s17, 1
      %s299 = smul.addr %s298, 18
      %s300 = smul.addr %s299, 4
      %s301 = scalar_lea.vmem %s2, %s300
      %p302 = scmp.lt.s32.totalorder %s17, 1
      %s303 = scalar_select %p302, %s17, 1
      %s304 = smul.addr %s303, 18
      %s305 = smul.addr %s304, 4
      %s306 = scalar_lea.vmem %s3, %s305
      %p307 = scmp.lt.s32.totalorder %s17, 1
      %s308 = scalar_select %p307, %s17, 1
      %s309 = smul.addr %s308, 8
      %s310 = smul.addr %s309, 4
      %s311 = scalar_lea.vmem %s6, %s310
      %v313 = vld [vmem:[%s291] sm:$0xf]
      %v314 = vld [vmem:[%s291 + $0x8] sm:$0xf]
      %v315 = vld [vmem:[%s291 + $0x10] sm:$0xf]
      %v316 = vld [vmem:[%s291 + $0x18] sm:$0xf]
      %v317 = vld [vmem:[%s291 + $0x20] sm:$0xf]
      %v318 = vld [vmem:[%s291 + $0x28] sm:$0xf]
      %v319 = vld [vmem:[%s291 + $0x30] sm:$0xf]
      %v320 = vld [vmem:[%s291 + $0x38] sm:$0xf]
      %v321 = vld [vmem:[%s296] sm:$0xf]
      %v322 = vld [vmem:[%s296 + $0x8] sm:$0xf]
      %v323 = vld [vmem:[%s296 + $0x10] sm:$0xf]
      %v324 = vld [vmem:[%s296 + $0x18] sm:$0xf]
      %v325 = vld [vmem:[%s296 + $0x20] sm:$0xf]
      %v326 = vld [vmem:[%s296 + $0x28] sm:$0xf]
      %v327 = vld [vmem:[%s296 + $0x30] sm:$0xf]
      %v328 = vld [vmem:[%s296 + $0x38] sm:$0xf]
      %v329 = vld [vmem:[%s291 + $0x4] sm:$0x1]
      %v330 = vld [vmem:[%s291 + $0xc] sm:$0x1]
      %v331 = vld [vmem:[%s291 + $0x14] sm:$0x1]
      %v332 = vld [vmem:[%s291 + $0x1c] sm:$0x1]
      %v333 = vld [vmem:[%s291 + $0x24] sm:$0x1]
      %v334 = vld [vmem:[%s291 + $0x2c] sm:$0x1]
      %v335 = vld [vmem:[%s291 + $0x34] sm:$0x1]
      %v336 = vld [vmem:[%s291 + $0x3c] sm:$0x1]
      %v337 = vld [vmem:[%s301] sm:$0xf]
      %v338 = vld [vmem:[%s301 + $0x8] sm:$0xf]
      %v339 = vld [vmem:[%s301 + $0x10] sm:$0xf]
      %v340 = vld [vmem:[%s301 + $0x18] sm:$0xf]
      %v341 = vld [vmem:[%s301 + $0x20] sm:$0xf]
      %v342 = vld [vmem:[%s301 + $0x28] sm:$0xf]
      %v343 = vld [vmem:[%s301 + $0x30] sm:$0xf]
      %v344 = vld [vmem:[%s301 + $0x38] sm:$0xf]
      %v345 = vld [vmem:[%s306] sm:$0xf]
      %v346 = vld [vmem:[%s306 + $0x8] sm:$0xf]
      %v347 = vld [vmem:[%s306 + $0x10] sm:$0xf]
      %v348 = vld [vmem:[%s306 + $0x18] sm:$0xf]
      %v349 = vld [vmem:[%s306 + $0x20] sm:$0xf]
      %v350 = vld [vmem:[%s306 + $0x28] sm:$0xf]
      %v351 = vld [vmem:[%s306 + $0x30] sm:$0xf]
      %v352 = vld [vmem:[%s306 + $0x38] sm:$0xf]
      %v353 = vld [vmem:[%s301 + $0x4] sm:$0x1]
      %v354 = vld [vmem:[%s301 + $0xc] sm:$0x1]
      %v355 = vld [vmem:[%s301 + $0x14] sm:$0x1]
      %v356 = vld [vmem:[%s301 + $0x1c] sm:$0x1]
      %v357 = vld [vmem:[%s301 + $0x24] sm:$0x1]
      %v358 = vld [vmem:[%s301 + $0x2c] sm:$0x1]
      %v359 = vld [vmem:[%s301 + $0x34] sm:$0x1]
      %v360 = vld [vmem:[%s301 + $0x3c] sm:$0x1]
      %s361 = scalar_lea.vmem %s291, 8
      %v362 = vld [vmem:[%s361] sm:$0xf]
      %v363 = vld [vmem:[%s361 + $0x8] sm:$0xf]
      %v364 = vld [vmem:[%s361 + $0x10] sm:$0xf]
      %v365 = vld [vmem:[%s361 + $0x18] sm:$0xf]
      %v366 = vld [vmem:[%s361 + $0x20] sm:$0xf]
      %v367 = vld [vmem:[%s361 + $0x28] sm:$0xf]
      %v368 = vld [vmem:[%s361 + $0x30] sm:$0xf]
      %v369 = vld [vmem:[%s361 + $0x38] sm:$0xf]
      %s370 = scalar_lea.vmem %s296, 8
      %v371 = vld [vmem:[%s370] sm:$0xf]
      %v372 = vld [vmem:[%s370 + $0x8] sm:$0xf]
      %v373 = vld [vmem:[%s370 + $0x10] sm:$0xf]
      %v374 = vld [vmem:[%s370 + $0x18] sm:$0xf]
      %v375 = vld [vmem:[%s370 + $0x20] sm:$0xf]
      %v376 = vld [vmem:[%s370 + $0x28] sm:$0xf]
      %v377 = vld [vmem:[%s370 + $0x30] sm:$0xf]
      %v378 = vld [vmem:[%s370 + $0x38] sm:$0xf]
      %v379 = vld [vmem:[%s361 + $0x4] sm:$0x1]
      %v380 = vld [vmem:[%s361 + $0xc] sm:$0x1]
      %v381 = vld [vmem:[%s361 + $0x14] sm:$0x1]
      %v382 = vld [vmem:[%s361 + $0x1c] sm:$0x1]
      %v383 = vld [vmem:[%s361 + $0x24] sm:$0x1]
      %v384 = vld [vmem:[%s361 + $0x2c] sm:$0x1]
      %v385 = vld [vmem:[%s361 + $0x34] sm:$0x1]
      %v386 = vld [vmem:[%s361 + $0x3c] sm:$0x1]
      %v395 = vunpack.c.l.b16 %v321
      %v396 = vunpack.c.l.b16 %v322
      %v397 = vunpack.c.l.b16 %v323
      %v398 = vunpack.c.l.b16 %v324
      %v399 = vunpack.c.l.b16 %v325
      %v400 = vunpack.c.l.b16 %v326
      %v401 = vunpack.c.l.b16 %v327
      %v402 = vunpack.c.l.b16 %v328
      %v403 = vpack.c.b16 %v395, %v395
      %v404 = vpack.c.b16 %v396, %v396
      %v405 = vpack.c.b16 %v397, %v397
      %v406 = vpack.c.b16 %v398, %v398
      %v407 = vpack.c.b16 %v399, %v399
      %v408 = vpack.c.b16 %v400, %v400
      %v409 = vpack.c.b16 %v401, %v401
      %v410 = vpack.c.b16 %v402, %v402
      %411 = vrot.lane.b32.xlu0 %v403, 3
      %v412 = vpop.permute.xlu0 %411
      %413 = vrot.lane.b32.xlu0 %v404, 3
      %v414 = vpop.permute.xlu0 %413
      %415 = vrot.lane.b32.xlu0 %v405, 3
      %v416 = vpop.permute.xlu0 %415
      %417 = vrot.lane.b32.xlu0 %v406, 3
      %v418 = vpop.permute.xlu0 %417
      %419 = vrot.lane.b32.xlu0 %v407, 3
      %v420 = vpop.permute.xlu0 %419
      %421 = vrot.lane.b32.xlu0 %v408, 3
      %v422 = vpop.permute.xlu0 %421
      %423 = vrot.lane.b32.xlu0 %v409, 3
      %v424 = vpop.permute.xlu0 %423
      %425 = vrot.lane.b32.xlu0 %v410, 3
      %v426 = vpop.permute.xlu0 %425
      %v443 = vunpack.c.l.b16 %v313
      %v444 = vunpack.c.l.b16 %v329
      %v445 = vunpack.c.l.b16 %v314
      %v446 = vunpack.c.l.b16 %v330
      %v447 = vunpack.c.l.b16 %v315
      %v448 = vunpack.c.l.b16 %v331
      %v449 = vunpack.c.l.b16 %v316
      %v450 = vunpack.c.l.b16 %v332
      %v451 = vunpack.c.l.b16 %v317
      %v452 = vunpack.c.l.b16 %v333
      %v453 = vunpack.c.l.b16 %v318
      %v454 = vunpack.c.l.b16 %v334
      %v455 = vunpack.c.l.b16 %v319
      %v456 = vunpack.c.l.b16 %v335
      %v457 = vunpack.c.l.b16 %v320
      %v458 = vunpack.c.l.b16 %v336
      %v459 = vpack.c.b16 %v444, %v443
      %v460 = vpack.c.b16 %v446, %v445
      %v461 = vpack.c.b16 %v448, %v447
      %v462 = vpack.c.b16 %v450, %v449
      %v463 = vpack.c.b16 %v452, %v451
      %v464 = vpack.c.b16 %v454, %v453
      %v465 = vpack.c.b16 %v456, %v455
      %v466 = vpack.c.b16 %v458, %v457
      %v468 = vshrl.u32 %v459, 16
      %v470 = vshll.u32 %v459, 16
      %v472 = vrot.slane %v470, 1
      %v473 = vor.u32 %v468, %v472
      %v475 = vshrl.u32 %v460, 16
      %v477 = vshll.u32 %v460, 16
      %v479 = vrot.slane %v477, 1
      %v480 = vor.u32 %v475, %v479
      %v482 = vshrl.u32 %v461, 16
      %v484 = vshll.u32 %v461, 16
      %v486 = vrot.slane %v484, 1
      %v487 = vor.u32 %v482, %v486
      %v489 = vshrl.u32 %v462, 16
      %v491 = vshll.u32 %v462, 16
      %v493 = vrot.slane %v491, 1
      %v494 = vor.u32 %v489, %v493
      %v496 = vshrl.u32 %v463, 16
      %v498 = vshll.u32 %v463, 16
      %v500 = vrot.slane %v498, 1
      %v501 = vor.u32 %v496, %v500
      %v503 = vshrl.u32 %v464, 16
      %v505 = vshll.u32 %v464, 16
      %v507 = vrot.slane %v505, 1
      %v508 = vor.u32 %v503, %v507
      %v510 = vshrl.u32 %v465, 16
      %v512 = vshll.u32 %v465, 16
      %v514 = vrot.slane %v512, 1
      %v515 = vor.u32 %v510, %v514
      %v517 = vshrl.u32 %v466, 16
      %v519 = vshll.u32 %v466, 16
      %v521 = vrot.slane %v519, 1
      %v522 = vor.u32 %v517, %v521
      %523 = vrot.lane.b32.xlu0 %v473, 6
      %v524 = vpop.permute.xlu0 %523
      %525 = vrot.lane.b32.xlu0 %v480, 6
      %v526 = vpop.permute.xlu0 %525
      %527 = vrot.lane.b32.xlu0 %v487, 6
      %v528 = vpop.permute.xlu0 %527
      %529 = vrot.lane.b32.xlu0 %v494, 6
      %v530 = vpop.permute.xlu0 %529
      %531 = vrot.lane.b32.xlu0 %v501, 6
      %v532 = vpop.permute.xlu0 %531
      %533 = vrot.lane.b32.xlu0 %v508, 6
      %v534 = vpop.permute.xlu0 %533
      %535 = vrot.lane.b32.xlu0 %v515, 6
      %v536 = vpop.permute.xlu0 %535
      %537 = vrot.lane.b32.xlu0 %v522, 6
      %v538 = vpop.permute.xlu0 %537
      %v547 = vunpack.c.l.b16 %v337
      %v548 = vunpack.c.l.b16 %v338
      %v549 = vunpack.c.l.b16 %v339
      %v550 = vunpack.c.l.b16 %v340
      %v551 = vunpack.c.l.b16 %v341
      %v552 = vunpack.c.l.b16 %v342
      %v553 = vunpack.c.l.b16 %v343
      %v554 = vunpack.c.l.b16 %v344
      %v555 = vpack.c.b16 %v547, %v547
      %v556 = vpack.c.b16 %v548, %v548
      %v557 = vpack.c.b16 %v549, %v549
      %v558 = vpack.c.b16 %v550, %v550
      %v559 = vpack.c.b16 %v551, %v551
      %v560 = vpack.c.b16 %v552, %v552
      %v561 = vpack.c.b16 %v553, %v553
      %v562 = vpack.c.b16 %v554, %v554
      %563 = vrot.lane.b32.xlu0 %v555, 9
      %v564 = vpop.permute.xlu0 %563
      %565 = vrot.lane.b32.xlu0 %v556, 9
      %v566 = vpop.permute.xlu0 %565
      %567 = vrot.lane.b32.xlu0 %v557, 9
      %v568 = vpop.permute.xlu0 %567
      %569 = vrot.lane.b32.xlu0 %v558, 9
      %v570 = vpop.permute.xlu0 %569
      %571 = vrot.lane.b32.xlu0 %v559, 9
      %v572 = vpop.permute.xlu0 %571
      %573 = vrot.lane.b32.xlu0 %v560, 9
      %v574 = vpop.permute.xlu0 %573
      %575 = vrot.lane.b32.xlu0 %v561, 9
      %v576 = vpop.permute.xlu0 %575
      %577 = vrot.lane.b32.xlu0 %v562, 9
      %v578 = vpop.permute.xlu0 %577
      %v587 = vunpack.c.l.b16 %v345
      %v588 = vunpack.c.l.b16 %v346
      %v589 = vunpack.c.l.b16 %v347
      %v590 = vunpack.c.l.b16 %v348
      %v591 = vunpack.c.l.b16 %v349
      %v592 = vunpack.c.l.b16 %v350
      %v593 = vunpack.c.l.b16 %v351
      %v594 = vunpack.c.l.b16 %v352
      %v595 = vpack.c.b16 %v587, %v587
      %v596 = vpack.c.b16 %v588, %v588
      %v597 = vpack.c.b16 %v589, %v589
      %v598 = vpack.c.b16 %v590, %v590
      %v599 = vpack.c.b16 %v591, %v591
      %v600 = vpack.c.b16 %v592, %v592
      %v601 = vpack.c.b16 %v593, %v593
      %v602 = vpack.c.b16 %v594, %v594
      %603 = vrot.lane.b32.xlu0 %v595, 12
      %v604 = vpop.permute.xlu0 %603
      %605 = vrot.lane.b32.xlu0 %v596, 12
      %v606 = vpop.permute.xlu0 %605
      %607 = vrot.lane.b32.xlu0 %v597, 12
      %v608 = vpop.permute.xlu0 %607
      %609 = vrot.lane.b32.xlu0 %v598, 12
      %v610 = vpop.permute.xlu0 %609
      %611 = vrot.lane.b32.xlu0 %v599, 12
      %v612 = vpop.permute.xlu0 %611
      %613 = vrot.lane.b32.xlu0 %v600, 12
      %v614 = vpop.permute.xlu0 %613
      %615 = vrot.lane.b32.xlu0 %v601, 12
      %v616 = vpop.permute.xlu0 %615
      %617 = vrot.lane.b32.xlu0 %v602, 12
      %v618 = vpop.permute.xlu0 %617
      %v627 = vunpack.c.l.b16 %v353
      %v628 = vunpack.c.l.b16 %v354
      %v629 = vunpack.c.l.b16 %v355
      %v630 = vunpack.c.l.b16 %v356
      %v631 = vunpack.c.l.b16 %v357
      %v632 = vunpack.c.l.b16 %v358
      %v633 = vunpack.c.l.b16 %v359
      %v634 = vunpack.c.l.b16 %v360
      %v635 = vpack.c.b16 %v627, %v547
      %v636 = vpack.c.b16 %v628, %v548
      %v637 = vpack.c.b16 %v629, %v549
      %v638 = vpack.c.b16 %v630, %v550
      %v639 = vpack.c.b16 %v631, %v551
      %v640 = vpack.c.b16 %v632, %v552
      %v641 = vpack.c.b16 %v633, %v553
      %v642 = vpack.c.b16 %v634, %v554
      %v644 = vshrl.u32 %v635, 16
      %v646 = vshll.u32 %v635, 16
      %v648 = vrot.slane %v646, 1
      %v649 = vor.u32 %v644, %v648
      %v651 = vshrl.u32 %v636, 16
      %v653 = vshll.u32 %v636, 16
      %v655 = vrot.slane %v653, 1
      %v656 = vor.u32 %v651, %v655
      %v658 = vshrl.u32 %v637, 16
      %v660 = vshll.u32 %v637, 16
      %v662 = vrot.slane %v660, 1
      %v663 = vor.u32 %v658, %v662
      %v665 = vshrl.u32 %v638, 16
      %v667 = vshll.u32 %v638, 16
      %v669 = vrot.slane %v667, 1
      %v670 = vor.u32 %v665, %v669
      %v672 = vshrl.u32 %v639, 16
      %v674 = vshll.u32 %v639, 16
      %v676 = vrot.slane %v674, 1
      %v677 = vor.u32 %v672, %v676
      %v679 = vshrl.u32 %v640, 16
      %v681 = vshll.u32 %v640, 16
      %v683 = vrot.slane %v681, 1
      %v684 = vor.u32 %v679, %v683
      %v686 = vshrl.u32 %v641, 16
      %v688 = vshll.u32 %v641, 16
      %v690 = vrot.slane %v688, 1
      %v691 = vor.u32 %v686, %v690
      %v693 = vshrl.u32 %v642, 16
      %v695 = vshll.u32 %v642, 16
      %v697 = vrot.slane %v695, 1
      %v698 = vor.u32 %v693, %v697
      %699 = vrot.lane.b32.xlu0 %v649, 15
      %v700 = vpop.permute.xlu0 %699
      %701 = vrot.lane.b32.xlu0 %v656, 15
      %v702 = vpop.permute.xlu0 %701
      %703 = vrot.lane.b32.xlu0 %v663, 15
      %v704 = vpop.permute.xlu0 %703
      %705 = vrot.lane.b32.xlu0 %v670, 15
      %v706 = vpop.permute.xlu0 %705
      %707 = vrot.lane.b32.xlu0 %v677, 15
      %v708 = vpop.permute.xlu0 %707
      %709 = vrot.lane.b32.xlu0 %v684, 15
      %v710 = vpop.permute.xlu0 %709
      %711 = vrot.lane.b32.xlu0 %v691, 15
      %v712 = vpop.permute.xlu0 %711
      %713 = vrot.lane.b32.xlu0 %v698, 15
      %v714 = vpop.permute.xlu0 %713
      %v723 = vunpack.c.l.b16 %v362
      %v724 = vunpack.c.l.b16 %v363
      %v725 = vunpack.c.l.b16 %v364
      %v726 = vunpack.c.l.b16 %v365
      %v727 = vunpack.c.l.b16 %v366
      %v728 = vunpack.c.l.b16 %v367
      %v729 = vunpack.c.l.b16 %v368
      %v730 = vunpack.c.l.b16 %v369
      %v731 = vpack.c.b16 %v723, %v723
      %v732 = vpack.c.b16 %v724, %v724
      %v733 = vpack.c.b16 %v725, %v725
      %v734 = vpack.c.b16 %v726, %v726
      %v735 = vpack.c.b16 %v727, %v727
      %v736 = vpack.c.b16 %v728, %v728
      %v737 = vpack.c.b16 %v729, %v729
      %v738 = vpack.c.b16 %v730, %v730
      %739 = vrot.lane.b32.xlu0 %v731, 18
      %v740 = vpop.permute.xlu0 %739
      %741 = vrot.lane.b32.xlu0 %v732, 18
      %v742 = vpop.permute.xlu0 %741
      %743 = vrot.lane.b32.xlu0 %v733, 18
      %v744 = vpop.permute.xlu0 %743
      %745 = vrot.lane.b32.xlu0 %v734, 18
      %v746 = vpop.permute.xlu0 %745
      %747 = vrot.lane.b32.xlu0 %v735, 18
      %v748 = vpop.permute.xlu0 %747
      %749 = vrot.lane.b32.xlu0 %v736, 18
      %v750 = vpop.permute.xlu0 %749
      %751 = vrot.lane.b32.xlu0 %v737, 18
      %v752 = vpop.permute.xlu0 %751
      %753 = vrot.lane.b32.xlu0 %v738, 18
      %v754 = vpop.permute.xlu0 %753
      %v763 = vunpack.c.l.b16 %v371
      %v764 = vunpack.c.l.b16 %v372
      %v765 = vunpack.c.l.b16 %v373
      %v766 = vunpack.c.l.b16 %v374
      %v767 = vunpack.c.l.b16 %v375
      %v768 = vunpack.c.l.b16 %v376
      %v769 = vunpack.c.l.b16 %v377
      %v770 = vunpack.c.l.b16 %v378
      %v771 = vpack.c.b16 %v763, %v763
      %v772 = vpack.c.b16 %v764, %v764
      %v773 = vpack.c.b16 %v765, %v765
      %v774 = vpack.c.b16 %v766, %v766
      %v775 = vpack.c.b16 %v767, %v767
      %v776 = vpack.c.b16 %v768, %v768
      %v777 = vpack.c.b16 %v769, %v769
      %v778 = vpack.c.b16 %v770, %v770
      %779 = vrot.lane.b32.xlu0 %v771, 21
      %v780 = vpop.permute.xlu0 %779
      %781 = vrot.lane.b32.xlu0 %v772, 21
      %v782 = vpop.permute.xlu0 %781
      %783 = vrot.lane.b32.xlu0 %v773, 21
      %v784 = vpop.permute.xlu0 %783
      %785 = vrot.lane.b32.xlu0 %v774, 21
      %v786 = vpop.permute.xlu0 %785
      %787 = vrot.lane.b32.xlu0 %v775, 21
      %v788 = vpop.permute.xlu0 %787
      %789 = vrot.lane.b32.xlu0 %v776, 21
      %v790 = vpop.permute.xlu0 %789
      %791 = vrot.lane.b32.xlu0 %v777, 21
      %v792 = vpop.permute.xlu0 %791
      %793 = vrot.lane.b32.xlu0 %v778, 21
      %v794 = vpop.permute.xlu0 %793
      %v803 = vunpack.c.l.b16 %v379
      %v804 = vunpack.c.l.b16 %v380
      %v805 = vunpack.c.l.b16 %v381
      %v806 = vunpack.c.l.b16 %v382
      %v807 = vunpack.c.l.b16 %v383
      %v808 = vunpack.c.l.b16 %v384
      %v809 = vunpack.c.l.b16 %v385
      %v810 = vunpack.c.l.b16 %v386
      %v811 = vpack.c.b16 %v803, %v723
      %v812 = vpack.c.b16 %v804, %v724
      %v813 = vpack.c.b16 %v805, %v725
      %v814 = vpack.c.b16 %v806, %v726
      %v815 = vpack.c.b16 %v807, %v727
      %v816 = vpack.c.b16 %v808, %v728
      %v817 = vpack.c.b16 %v809, %v729
      %v818 = vpack.c.b16 %v810, %v730
      %v820 = vshrl.u32 %v811, 16
      %v822 = vshll.u32 %v811, 16
      %v824 = vrot.slane %v822, 1
      %v825 = vor.u32 %v820, %v824
      %v827 = vshrl.u32 %v812, 16
      %v829 = vshll.u32 %v812, 16
      %v831 = vrot.slane %v829, 1
      %v832 = vor.u32 %v827, %v831
      %v834 = vshrl.u32 %v813, 16
      %v836 = vshll.u32 %v813, 16
      %v838 = vrot.slane %v836, 1
      %v839 = vor.u32 %v834, %v838
      %v841 = vshrl.u32 %v814, 16
      %v843 = vshll.u32 %v814, 16
      %v845 = vrot.slane %v843, 1
      %v846 = vor.u32 %v841, %v845
      %v848 = vshrl.u32 %v815, 16
      %v850 = vshll.u32 %v815, 16
      %v852 = vrot.slane %v850, 1
      %v853 = vor.u32 %v848, %v852
      %v855 = vshrl.u32 %v816, 16
      %v857 = vshll.u32 %v816, 16
      %v859 = vrot.slane %v857, 1
      %v860 = vor.u32 %v855, %v859
      %v862 = vshrl.u32 %v817, 16
      %v864 = vshll.u32 %v817, 16
      %v866 = vrot.slane %v864, 1
      %v867 = vor.u32 %v862, %v866
      %v869 = vshrl.u32 %v818, 16
      %v871 = vshll.u32 %v818, 16
      %v873 = vrot.slane %v871, 1
      %v874 = vor.u32 %v869, %v873
      %875 = vrot.lane.b32.xlu0 %v825, 24
      %v876 = vpop.permute.xlu0 %875
      %877 = vrot.lane.b32.xlu0 %v832, 24
      %v878 = vpop.permute.xlu0 %877
      %879 = vrot.lane.b32.xlu0 %v839, 24
      %v880 = vpop.permute.xlu0 %879
      %881 = vrot.lane.b32.xlu0 %v846, 24
      %v882 = vpop.permute.xlu0 %881
      %883 = vrot.lane.b32.xlu0 %v853, 24
      %v884 = vpop.permute.xlu0 %883
      %885 = vrot.lane.b32.xlu0 %v860, 24
      %v886 = vpop.permute.xlu0 %885
      %887 = vrot.lane.b32.xlu0 %v867, 24
      %v888 = vpop.permute.xlu0 %887
      %889 = vrot.lane.b32.xlu0 %v874, 24
      %v890 = vpop.permute.xlu0 %889
      %vm891 = vcmask 23552
      %v894 = vsel %vm891, %v313, %v412
      %v897 = vsel %vm891, %v314, %v414
      %v900 = vsel %vm891, %v315, %v416
      %v903 = vsel %vm891, %v316, %v418
      %v906 = vsel %vm891, %v317, %v420
      %v909 = vsel %vm891, %v318, %v422
      %v912 = vsel %vm891, %v319, %v424
      %v915 = vsel %vm891, %v320, %v426
      %vm916 = vcmask 48128
      %v918 = vsel %vm916, %v894, %v524
      %v920 = vsel %vm916, %v897, %v526
      %v922 = vsel %vm916, %v900, %v528
      %v924 = vsel %vm916, %v903, %v530
      %v926 = vsel %vm916, %v906, %v532
      %v928 = vsel %vm916, %v909, %v534
      %v930 = vsel %vm916, %v912, %v536
      %v932 = vsel %vm916, %v915, %v538
      %vm933 = vcmask 72704
      %v935 = vsel %vm933, %v918, %v564
      %v937 = vsel %vm933, %v920, %v566
      %v939 = vsel %vm933, %v922, %v568
      %v941 = vsel %vm933, %v924, %v570
      %v943 = vsel %vm933, %v926, %v572
      %v945 = vsel %vm933, %v928, %v574
      %v947 = vsel %vm933, %v930, %v576
      %v949 = vsel %vm933, %v932, %v578
      %vm950 = vcmask 97280
      %v952 = vsel %vm950, %v935, %v604
      %v954 = vsel %vm950, %v937, %v606
      %v956 = vsel %vm950, %v939, %v608
      %v958 = vsel %vm950, %v941, %v610
      %v960 = vsel %vm950, %v943, %v612
      %v962 = vsel %vm950, %v945, %v614
      %v964 = vsel %vm950, %v947, %v616
      %v966 = vsel %vm950, %v949, %v618
      %vm967 = vcmask 121856
      %v969 = vsel %vm967, %v952, %v700
      %v971 = vsel %vm967, %v954, %v702
      %v973 = vsel %vm967, %v956, %v704
      %v975 = vsel %vm967, %v958, %v706
      %v977 = vsel %vm967, %v960, %v708
      %v979 = vsel %vm967, %v962, %v710
      %v981 = vsel %vm967, %v964, %v712
      %v983 = vsel %vm967, %v966, %v714
      %vm984 = vcmask 146432
      %v986 = vsel %vm984, %v969, %v740
      %v988 = vsel %vm984, %v971, %v742
      %v990 = vsel %vm984, %v973, %v744
      %v992 = vsel %vm984, %v975, %v746
      %v994 = vsel %vm984, %v977, %v748
      %v996 = vsel %vm984, %v979, %v750
      %v998 = vsel %vm984, %v981, %v752
      %v1000 = vsel %vm984, %v983, %v754
      %vm1001 = vcmask 171008
      %v1003 = vsel %vm1001, %v986, %v780
      %v1005 = vsel %vm1001, %v988, %v782
      %v1007 = vsel %vm1001, %v990, %v784
      %v1009 = vsel %vm1001, %v992, %v786
      %v1011 = vsel %vm1001, %v994, %v788
      %v1013 = vsel %vm1001, %v996, %v790
      %v1015 = vsel %vm1001, %v998, %v792
      %v1017 = vsel %vm1001, %v1000, %v794
      %vm1018 = vcmask 195584
      %v1020 = vsel %vm1018, %v1003, %v876
      %v1022 = vsel %vm1018, %v1005, %v878
      %v1024 = vsel %vm1018, %v1007, %v880
      %v1026 = vsel %vm1018, %v1009, %v882
      %v1028 = vsel %vm1018, %v1011, %v884
      %v1030 = vsel %vm1018, %v1013, %v886
      %v1032 = vsel %vm1018, %v1015, %v888
      %v1034 = vsel %vm1018, %v1017, %v890
      %v1035 = vld [vmem:[%s4] sm:$0xf]
      %v1036 = vld [vmem:[%s4 + $0x4] sm:$0xf]
      %v1037 = vld [vmem:[%s4 + $0x8] sm:$0xf]
      %v1038 = vld [vmem:[%s4 + $0xc] sm:$0x3]
      %v1039 = vld [vmem:[%s5] sm:$0x1]
      %v1041 = vperm.slane %v1039, 0
      %v1051 = vunpack.c.l.b16 %v1020
      %v1052 = vunpack.c.l.b16 %v1022
      %v1053 = vunpack.c.l.b16 %v1024
      %v1054 = vunpack.c.l.b16 %v1026
      %v1055 = vunpack.c.l.b16 %v1028
      %v1056 = vunpack.c.l.b16 %v1030
      %v1057 = vunpack.c.l.b16 %v1032
      %v1058 = vunpack.c.l.b16 %v1034
      %v1059 = vpack.c.b16 %v1052, %v1051
      %v1060 = vpack.c.b16 %v1054, %v1053
      %v1061 = vpack.c.b16 %v1056, %v1055
      %v1062 = vpack.c.b16 %v1058, %v1057
      %v1067 = vunpack.c.l.b16 %v1035
      %v1068 = vunpack.c.l.b16 %v1036
      %v1069 = vunpack.c.l.b16 %v1037
      %v1070 = vunpack.c.l.b16 %v1038
      %v1071 = vpack.c.b16 %v1068, %v1067
      %v1072 = vpack.c.b16 %v1070, %v1069
      %vm1074 = vcmask 220160
      %v1076 = vsel %vm1074, %v1059, 0
      %v1079 = vsel %vm1074, %v1060, 0
      %v1082 = vsel %vm1074, %v1061, 0
      %v1085 = vsel %vm1074, %v1062, 0
      %vm1087 = vcmask 1044480
      %vm1088 = vcmask 1045504
      %v1089 = vsel %vm1087, 4294967295, 65535
      %v1090 = vsel %vm1088, %v1089, 0
      %v1092 = vand.u32 %v1072, %v1090
      %1094 = vmatpush.bf16.msra.mxu0 0
      %1095 = vmatpush.bf16.msra.mxu0 0
      %1096 = vmatpush.bf16.msra.mxu0 0
      %1097 = vmatpush.bf16.msra.mxu0 0
      %1098 = vmatpush.bf16.msra.mxu0 0
      %1099 = vmatpush.bf16.msra.mxu0 0
      %1100 = vmatpush.bf16.msra.mxu0 %v1092
      %1101 = vmatpush.bf16.msra.mxu0 %v1071
      %1102 = vmatmul.bf16.gmra.mxu0 %v1076
      %v1103 = vpop.f32.mrf.mxu0
      %v1104 = vadd.f32 %v1041, %v1103
      %v1105 = vpop.f32.mrf.mxu0
      %v1106 = vadd.f32 %v1041, %v1105
      %1107 = vmatmul.bf16.gmra.mxu0 %v1079
      %v1108 = vpop.f32.mrf.mxu0
      %v1109 = vadd.f32 %v1041, %v1108
      %v1110 = vpop.f32.mrf.mxu0
      %v1111 = vadd.f32 %v1041, %v1110
      %1112 = vmatmul.bf16.gmra.mxu0 %v1082
      %v1113 = vpop.f32.mrf.mxu0
      %v1114 = vadd.f32 %v1041, %v1113
      %v1115 = vpop.f32.mrf.mxu0
      %v1116 = vadd.f32 %v1041, %v1115
      %1117 = vmatmul.bf16.gmra.mxu0 %v1085
      %v1118 = vpop.f32.mrf.mxu0
      %v1119 = vadd.f32 %v1041, %v1118
      %v1120 = vpop.f32.mrf.mxu0
      %v1121 = vadd.f32 %v1041, %v1120
      %1122 = vdwg.mxu0
      %v1123 = vmax.f32 %v1104, 0.0
      %v1124 = vmax.f32 %v1106, 0.0
      %v1125 = vmax.f32 %v1109, 0.0
      %v1126 = vmax.f32 %v1111, 0.0
      %v1127 = vmax.f32 %v1114, 0.0
      %v1128 = vmax.f32 %v1116, 0.0
      %v1129 = vmax.f32 %v1119, 0.0
      %v1130 = vmax.f32 %v1121, 0.0
      %v1131 = vpack.c.bf16 %v1123, %v1123
      %v1132 = vpack.c.bf16 %v1124, %v1124
      %v1133 = vpack.c.bf16 %v1125, %v1125
      %v1134 = vpack.c.bf16 %v1126, %v1126
      %v1135 = vpack.c.bf16 %v1127, %v1127
      %v1136 = vpack.c.bf16 %v1128, %v1128
      %v1137 = vpack.c.bf16 %v1129, %v1129
      %v1138 = vpack.c.bf16 %v1130, %v1130
      %vm1139 = vcmask 125952
      %1140 = vst.msk [vmem:[%s311] sm:$0xf] %vm1139, %v1131
      %1141 = vst.msk [vmem:[%s311 + $0x4] sm:$0xf] %vm1139, %v1132
      %1142 = vst.msk [vmem:[%s311 + $0x8] sm:$0xf] %vm1139, %v1133
      %1143 = vst.msk [vmem:[%s311 + $0xc] sm:$0xf] %vm1139, %v1134
      %1144 = vst.msk [vmem:[%s311 + $0x10] sm:$0xf] %vm1139, %v1135
      %1145 = vst.msk [vmem:[%s311 + $0x14] sm:$0xf] %vm1139, %v1136
      %1146 = vst.msk [vmem:[%s311 + $0x18] sm:$0xf] %vm1139, %v1137
      %1147 = vst.msk [vmem:[%s311 + $0x1c] sm:$0xf] %vm1139, %v1138
      %p1148 = scmp.lt.s32.totalorder %s17, 1
      %s1149 = scalar_select %p1148, %s17, 1
      %s1150 = smul.addr %s1149, 8
      %s1151 = smul.addr %s1150, 4
      %s1152 = scalar_lea.vmem %s6, %s1151
      // Predicated region
      $region45: #{fwd.3} parent=43 // pred_check
        %p1153 = pneg %p181
      $region46: #{fwd.3} parent=43 // pred_check_branch
        %1155 = sbr.rel (%p1153) target = $region48
      $region47: #{fwd.3} parent=43 // pred_region
        _
      $region48: #{fwd.3} parent=43 // pred_fallthru
        _
    $region44: #{fwd.3} parent=5 // pred_fallthru
      _
    %p1156 = scmp.le.s32.totalorder 2, %s12
    // Predicated region
    $region49: #{fwd.3} parent=5 // pred_check
      %p1157 = pneg %p1156
    $region50: #{fwd.3} parent=5 // pred_check_branch
      %1159 = sbr.rel (%p1157) target = $region52
    $region51: #{fwd.3} parent=5 // pred_region
      %s1160 = ssub.s32 %s12, 2
      // Predicated region
      $region53: #{fwd.3} parent=51 // pred_check
        %p1161 = pneg %p187
      $region54: #{fwd.3} parent=51 // pred_check_branch
        %1163 = sbr.rel (%p1161) target = $region56
      $region55: #{fwd.3} parent=51 // pred_region
        %p1164 = scmp.lt.s32.totalorder %s18, 1
        %s1165 = scalar_select %p1164, %s18, 1
        %s1166 = smul.addr %s1165, 8
        %s1167 = smul.addr %s1166, 4
        %s1168 = scalar_lea.vmem %s6, %s1167
      $region56: #{fwd.3} parent=51 // pred_fallthru
        _
    $region52: #{fwd.3} parent=5 // pred_fallthru
      _
  $region6: #{fwd.3} parent=0 // loop_footer
    %s16 = sadd.s32 1, %s12
  $region7: #{fwd.3} parent=0 // loop_footer_branch
    %11 = sbr.rel target = $region3
  $region8: #{fwd.3} parent=0 // loop_exit
    _

// kernel: fwd.5
$region0: #{fwd.5}
  #allocation0 [shape = 'u32[]', space=smem, size = 0x4, offset = 0x4, fixed_abs, tag = 'smem constant byte address 0x4 - core index']
  #allocation1 [shape = 'u32[72,128]{1,0:T(1,128)}', space=vmem, size = 0x9000, scoped, tag = 'internal scratch']
  %s0 = inlined_call_operand.vmem [shape: bf16[2,3,3,32], index: 0, kind: input, shape index: {}]
  %s1 = inlined_call_operand.vmem [shape: bf16[2,3,3,32], index: 1, kind: input, shape index: {}]
  %s2 = inlined_call_operand.vmem [shape: bf16[2,3,3,32], index: 2, kind: input, shape index: {}]
  %s3 = inlined_call_operand.vmem [shape: bf16[2,3,3,32], index: 3, kind: input, shape index: {}]
  %s4 = inlined_call_operand.vmem [shape: bf16[288,64], index: 4, kind: input, shape index: {}]
  %s5 = inlined_call_operand.vmem [shape: f32[1,64], index: 5, kind: input, shape index: {}]
  %s6 = inlined_call_operand.hbm [shape: f32[2,2,2,64], index: 6, kind: output, shape index: {}]
  %s7 = sld [smem:[#allocation0]]
  $region57: #{fwd.5} parent=0
    _
  %s9 = ssub.s32 1, %s7
  %s10 = scalar_select 0, %s9, %s7
  $region1: #{fwd.5} parent=0
    #allocation2 [shape = 'u8[4096]{0}', space=vmem, size = 0x1000, scoped, tag = 'output window, operand 0']
    #allocation3 [shape = 's32[2]{0}', space=sflag, size = 0x8, scoped, tag = 'scoped memory for fwd.5']
    %11 = vsyncpa [#allocation3], 0
    %s12 = scalar_lea.sflag [#allocation3], 1
    %13 = vsyncpa %s12, 0
    loop: start=0, step=1, limit=4
    $region2: #{fwd.5} parent=1 // loop_pre_header
      _
    $region3: #{fwd.5} parent=1 // loop_header
      %s15 = sphi 0, %s19
      %p16 = scmp.ge.s32.totalorder %s15, 4
      %s25 = sphi 0, %s27
      %s28 = sphi 0, %s25
      %s29 = sphi 0, %s28
      %s45 = sphi 0, %s29
      %s51 = sphi 0, %s53
      %s54 = sphi 0, %s51
      %s55 = sphi 0, %s54
      %s71 = sphi 0, %s55
      %s77 = sphi 0, %s79
      %s80 = sphi 0, %s77
      %s81 = sphi 0, %s80
      %s97 = sphi 0, %s81
      %s103 = sphi 0, %s105
      %s106 = sphi 0, %s103
      %s107 = sphi 0, %s106
      %s123 = sphi 0, %s107
      %s127 = sphi 0, %s127
      %s129 = sphi 0, %s127
      %s130 = sphi 0, %s129
      %s144 = sphi 0, %s130
      %s148 = sphi 0, %s148
      %s150 = sphi 0, %s148
      %s151 = sphi 0, %s150
      %s165 = sphi 0, %s151
      %s171 = sphi 0, %s173
      %s174 = sphi 0, %s171
      %s175 = sphi 0, %s174
      %s191 = sphi 0, %s175
    $region4: #{fwd.5} parent=1 // loop_header_branch
      %18 = sbr.rel (%p16) target = $region8
    $region5: #{fwd.5} parent=1 // loop_body
      %s20 = ssub.s32 %s15, 1
      %s21 = ssub.s32 %s15, 2
      %s22 = sadd.s32 %s15, 1
      %s23 = ssub.s32 %s15, %s22
      %p24 = scmp.eq.s32.totalorder %s23, 0
      %s26 = sadd.s32 %s25, 1
      %s27 = scalar_select %p24, %s25, %s26
      %p30 = pneg %p24
      %p31 = scmp.eq.s32.totalorder %s15, 1
      %p32 = por %p30, %p31
      %p33 = scmp.ne.s32.totalorder %s25, %s28
      %p34 = scmp.eq.s32.totalorder %s15, 0
      %p35 = por %p33, %p34
      %p36 = scmp.ne.s32.totalorder %s25, %s28
      %p37 = scmp.eq.s32.totalorder %s20, 1
      %p38 = por %p36, %p37
      %p39 = scmp.ne.s32.totalorder %s28, %s29
      %p40 = scmp.eq.s32.totalorder %s20, 0
      %p41 = por %p39, %p40
      %p42 = scmp.ne.s32.totalorder %s28, %s29
      %p43 = scmp.eq.s32.totalorder %s21, 1
      %p44 = por %p42, %p43
      %p46 = scmp.ne.s32.totalorder %s29, %s45
      %p47 = scmp.eq.s32.totalorder %s21, 0
      %p48 = por %p46, %p47
      %s49 = ssub.s32 %s15, %s22
      %p50 = scmp.eq.s32.totalorder %s49, 0
      %s52 = sadd.s32 %s51, 1
      %s53 = scalar_select %p50, %s51, %s52
      %p56 = pneg %p50
      %p57 = scmp.eq.s32.totalorder %s15, 1
      %p58 = por %p56, %p57
      %p59 = scmp.ne.s32.totalorder %s51, %s54
      %p60 = scmp.eq.s32.totalorder %s15, 0
      %p61 = por %p59, %p60
      %p62 = scmp.ne.s32.totalorder %s51, %s54
      %p63 = scmp.eq.s32.totalorder %s20, 1
      %p64 = por %p62, %p63
      %p65 = scmp.ne.s32.totalorder %s54, %s55
      %p66 = scmp.eq.s32.totalorder %s20, 0
      %p67 = por %p65, %p66
      %p68 = scmp.ne.s32.totalorder %s54, %s55
      %p69 = scmp.eq.s32.totalorder %s21, 1
      %p70 = por %p68, %p69
      %p72 = scmp.ne.s32.totalorder %s55, %s71
      %p73 = scmp.eq.s32.totalorder %s21, 0
      %p74 = por %p72, %p73
      %s75 = ssub.s32 %s15, %s22
      %p76 = scmp.eq.s32.totalorder %s75, 0
      %s78 = sadd.s32 %s77, 1
      %s79 = scalar_select %p76, %s77, %s78
      %p82 = pneg %p76
      %p83 = scmp.eq.s32.totalorder %s15, 1
      %p84 = por %p82, %p83
      %p85 = scmp.ne.s32.totalorder %s77, %s80
      %p86 = scmp.eq.s32.totalorder %s15, 0
      %p87 = por %p85, %p86
      %p88 = scmp.ne.s32.totalorder %s77, %s80
      %p89 = scmp.eq.s32.totalorder %s20, 1
      %p90 = por %p88, %p89
      %p91 = scmp.ne.s32.totalorder %s80, %s81
      %p92 = scmp.eq.s32.totalorder %s20, 0
      %p93 = por %p91, %p92
      %p94 = scmp.ne.s32.totalorder %s80, %s81
      %p95 = scmp.eq.s32.totalorder %s21, 1
      %p96 = por %p94, %p95
      %p98 = scmp.ne.s32.totalorder %s81, %s97
      %p99 = scmp.eq.s32.totalorder %s21, 0
      %p100 = por %p98, %p99
      %s101 = ssub.s32 %s15, %s22
      %p102 = scmp.eq.s32.totalorder %s101, 0
      %s104 = sadd.s32 %s103, 1
      %s105 = scalar_select %p102, %s103, %s104
      %p108 = pneg %p102
      %p109 = scmp.eq.s32.totalorder %s15, 1
      %p110 = por %p108, %p109
      %p111 = scmp.ne.s32.totalorder %s103, %s106
      %p112 = scmp.eq.s32.totalorder %s15, 0
      %p113 = por %p111, %p112
      %p114 = scmp.ne.s32.totalorder %s103, %s106
      %p115 = scmp.eq.s32.totalorder %s20, 1
      %p116 = por %p114, %p115
      %p117 = scmp.ne.s32.totalorder %s106, %s107
      %p118 = scmp.eq.s32.totalorder %s20, 0
      %p119 = por %p117, %p118
      %p120 = scmp.ne.s32.totalorder %s106, %s107
      %p121 = scmp.eq.s32.totalorder %s21, 1
      %p122 = por %p120, %p121
      %p124 = scmp.ne.s32.totalorder %s107, %s123
      %p125 = scmp.eq.s32.totalorder %s21, 0
      %p126 = por %p124, %p125
      %s128 = sadd.s32 %s127, 1
      %p131 = scmp.eq.s32.totalorder %s15, 1
      %p132 = scmp.ne.s32.totalorder %s127, %s129
      %p133 = scmp.eq.s32.totalorder %s15, 0
      %p134 = por %p132, %p133
      %p135 = scmp.ne.s32.totalorder %s127, %s129
      %p136 = scmp.eq.s32.totalorder %s20, 1
      %p137 = por %p135, %p136
      %p138 = scmp.ne.s32.totalorder %s129, %s130
      %p139 = scmp.eq.s32.totalorder %s20, 0
      %p140 = por %p138, %p139
      %p141 = scmp.ne.s32.totalorder %s129, %s130
      %p142 = scmp.eq.s32.totalorder %s21, 1
      %p143 = por %p141, %p142
      %p145 = scmp.ne.s32.totalorder %s130, %s144
      %p146 = scmp.eq.s32.totalorder %s21, 0
      %p147 = por %p145, %p146
      %s149 = sadd.s32 %s148, 1
      %p152 = scmp.eq.s32.totalorder %s15, 1
      %p153 = scmp.ne.s32.totalorder %s148, %s150
      %p154 = scmp.eq.s32.totalorder %s15, 0
      %p155 = por %p153, %p154
      %p156 = scmp.ne.s32.totalorder %s148, %s150
      %p157 = scmp.eq.s32.totalorder %s20, 1
      %p158 = por %p156, %p157
      %p159 = scmp.ne.s32.totalorder %s150, %s151
      %p160 = scmp.eq.s32.totalorder %s20, 0
      %p161 = por %p159, %p160
      %p162 = scmp.ne.s32.totalorder %s150, %s151
      %p163 = scmp.eq.s32.totalorder %s21, 1
      %p164 = por %p162, %p163
      %p166 = scmp.ne.s32.totalorder %s151, %s165
      %p167 = scmp.eq.s32.totalorder %s21, 0
      %p168 = por %p166, %p167
      %s169 = ssub.s32 %s15, %s22
      %p170 = scmp.eq.s32.totalorder %s169, 0
      %s172 = sadd.s32 %s171, 1
      %s173 = scalar_select %p170, %s171, %s172
      %p176 = pneg %p170
      %p177 = scmp.eq.s32.totalorder %s15, 1
      %p178 = por %p176, %p177
      %p179 = scmp.ne.s32.totalorder %s171, %s174
      %p180 = scmp.eq.s32.totalorder %s15, 0
      %p181 = por %p179, %p180
      %p182 = scmp.ne.s32.totalorder %s171, %s174
      %p183 = scmp.eq.s32.totalorder %s20, 1
      %p184 = por %p182, %p183
      %p185 = scmp.ne.s32.totalorder %s174, %s175
      %p186 = scmp.eq.s32.totalorder %s20, 0
      %p187 = por %p185, %p186
      %p188 = scmp.ne.s32.totalorder %s174, %s175
      %p189 = scmp.eq.s32.totalorder %s21, 1
      %p190 = por %p188, %p189
      %p192 = scmp.ne.s32.totalorder %s175, %s191
      %p193 = scmp.eq.s32.totalorder %s21, 0
      %p194 = por %p192, %p193
      %p195 = scmp.le.s32.totalorder 1, %s15
      %p196 = scmp.lt.s32.totalorder %s15, 3
      %p197 = pnand %p195, %p196
      %p198 = pneg %p197
      // Predicated region
      $region9: #{fwd.5} parent=5 // pred_check
        _
      $region10: #{fwd.5} parent=5 // pred_check_branch
        %200 = sbr.rel (%p197) target = $region12
      $region11: #{fwd.5} parent=5 // pred_region
        %s201 = ssub.s32 %s15, 1
        // Predicated region
        $region13: #{fwd.5} parent=11 // pred_check
          %p202 = pneg %p140
        $region14: #{fwd.5} parent=11 // pred_check_branch
          %204 = sbr.rel (%p202) target = $region16
        $region15: #{fwd.5} parent=11 // pred_region
          _
        $region16: #{fwd.5} parent=11 // pred_fallthru
          _
        // Predicated region
        $region17: #{fwd.5} parent=11 // pred_check
          %p205 = pneg %p161
        $region18: #{fwd.5} parent=11 // pred_check_branch
          %207 = sbr.rel (%p205) target = $region20
        $region19: #{fwd.5} parent=11 // pred_region
          _
        $region20: #{fwd.5} parent=11 // pred_fallthru
          _
      $region12: #{fwd.5} parent=5 // pred_fallthru
        _
      %p208 = scmp.lt.s32.totalorder %s15, 2
      // Predicated region
      $region21: #{fwd.5} parent=5 // pred_check
        %p209 = pneg %p208
      $region22: #{fwd.5} parent=5 // pred_check_branch
        %211 = sbr.rel (%p209) target = $region24
      $region23: #{fwd.5} parent=5 // pred_region
        // Predicated region
        $region25: #{fwd.5} parent=23 // pred_check
          %p212 = pneg %p35
        $region26: #{fwd.5} parent=23 // pred_check_branch
          %214 = sbr.rel (%p212) target = $region28
        $region27: #{fwd.5} parent=23 // pred_region
          %p215 = scmp.lt.s32.totalorder %s15, 1
          %s216 = scalar_select %p215, %s15, 1
          %s217 = smul.addr %s216, 3
          %s218 = smul.addr %s217, 2
          %s219 = scalar_lea.vmem %s0, %s218
        $region28: #{fwd.5} parent=23 // pred_fallthru
          _
        // Predicated region
        $region29: #{fwd.5} parent=23 // pred_check
          %p220 = pneg %p61
        $region30: #{fwd.5} parent=23 // pred_check_branch
          %222 = sbr.rel (%p220) target = $region32
        $region31: #{fwd.5} parent=23 // pred_region
          %p223 = scmp.lt.s32.totalorder %s15, 1
          %s224 = scalar_select %p223, %s15, 1
          %s225 = smul.addr %s224, 3
          %s226 = smul.addr %s225, 2
          %s227 = scalar_lea.vmem %s1, %s226
        $region32: #{fwd.5} parent=23 // pred_fallthru
          _
        // Predicated region
        $region33: #{fwd.5} parent=23 // pred_check
          %p228 = pneg %p87
        $region34: #{fwd.5} parent=23 // pred_check_branch
          %230 = sbr.rel (%p228) target = $region36
        $region35: #{fwd.5} parent=23 // pred_region
          %p231 = scmp.lt.s32.totalorder %s15, 1
          %s232 = scalar_select %p231, %s15, 1
          %s233 = smul.addr %s232, 3
          %s234 = smul.addr %s233, 2
          %s235 = scalar_lea.vmem %s2, %s234
        $region36: #{fwd.5} parent=23 // pred_fallthru
          _
        // Predicated region
        $region37: #{fwd.5} parent=23 // pred_check
          %p236 = pneg %p113
        $region38: #{fwd.5} parent=23 // pred_check_branch
          %238 = sbr.rel (%p236) target = $region40
        $region39: #{fwd.5} parent=23 // pred_region
          %p239 = scmp.lt.s32.totalorder %s15, 1
          %s240 = scalar_select %p239, %s15, 1
          %s241 = smul.addr %s240, 3
          %s242 = smul.addr %s241, 2
          %s243 = scalar_lea.vmem %s3, %s242
        $region40: #{fwd.5} parent=23 // pred_fallthru
          _
      $region24: #{fwd.5} parent=5 // pred_fallthru
        _
      %p244 = scmp.le.s32.totalorder 1, %s15
      %p245 = scmp.lt.s32.totalorder %s15, 3
      %p246 = pnand %p244, %p245
      %p247 = pneg %p246
      // Predicated region
      $region41: #{fwd.5} parent=5 // pred_check
        _
      $region42: #{fwd.5} parent=5 // pred_check_branch
        %249 = sbr.rel (%p246) target = $region44
      $region43: #{fwd.5} parent=5 // pred_region
        %s250 = ssub.s32 %s15, 1
        %p251 = scmp.lt.s32.totalorder %s20, 1
        %s252 = scalar_select %p251, %s20, 1
        %s253 = smul.addr %s252, 3
        %s254 = smul.addr %s253, 2
        %s255 = scalar_lea.vmem %s0, %s254
        %p256 = pneg %p41
        %p257 = pneg %p38
        %p258 = scmp.lt.s32.totalorder %s20, 1
        %s259 = scalar_select %p258, %s20, 1
        %s260 = smul.addr %s259, 3
        %s261 = smul.addr %s260, 2
        %s262 = scalar_lea.vmem %s1, %s261
        %p263 = pneg %p67
        %p264 = pneg %p64
        %p265 = scmp.lt.s32.totalorder %s20, 1
        %s266 = scalar_select %p265, %s20, 1
        %s267 = smul.addr %s266, 3
        %s268 = smul.addr %s267, 2
        %s269 = scalar_lea.vmem %s2, %s268
        %p270 = pneg %p93
        %p271 = pneg %p90
        %p272 = scmp.lt.s32.totalorder %s20, 1
        %s273 = scalar_select %p272, %s20, 1
        %s274 = smul.addr %s273, 3
        %s275 = smul.addr %s274, 2
        %s276 = scalar_lea.vmem %s3, %s275
        %p277 = pneg %p119
        %p278 = pneg %p116
        %p279 = pneg %p140
        %p280 = pneg %p137
        %p281 = pneg %p161
        %p282 = pneg %p158
        %p283 = pneg %p187
        %p284 = pneg %p184
        %s285 = sand.u32 %s174, 1
        %s286 = scalar_lea.sflag [#allocation3], %s285
        %s287 = sand.u32 %s174, 1
        %s288 = smul.addr %s287, 4
        %s289 = scalar_lea.vmem [#allocation2], %s288
        %p290 = scmp.lt.s32.totalorder %s20, 1
        %s291 = scalar_select %p290, %s20, 1
        %s292 = smul.addr %s291, 3
        %s293 = smul.addr %s292, 2
        %s294 = scalar_lea.vmem %s0, %s293
        %p295 = scmp.lt.s32.totalorder %s20, 1
        %s296 = scalar_select %p295, %s20, 1
        %s297 = smul.addr %s296, 3
        %s298 = smul.addr %s297, 2
        %s299 = scalar_lea.vmem %s1, %s298
        %p300 = scmp.lt.s32.totalorder %s20, 1
        %s301 = scalar_select %p300, %s20, 1
        %s302 = smul.addr %s301, 3
        %s303 = smul.addr %s302, 2
        %s304 = scalar_lea.vmem %s2, %s303
        %p305 = scmp.lt.s32.totalorder %s20, 1
        %s306 = scalar_select %p305, %s20, 1
        %s307 = smul.addr %s306, 3
        %s308 = smul.addr %s307, 2
        %s309 = scalar_lea.vmem %s3, %s308
        %v311 = vld [vmem:[%s294] sm:$0x1]
        %v312 = vld [vmem:[%s294 + $0x2] sm:$0x1]
        %v313 = vld [vmem:[%s299] sm:$0x1]
        %v314 = vld [vmem:[%s299 + $0x2] sm:$0x1]
        %v315 = vld [vmem:[%s294] sm:$0x3]
        %v316 = vld [vmem:[%s294 + $0x2] sm:$0x3]
        %v317 = vld [vmem:[%s304] sm:$0x1]
        %v318 = vld [vmem:[%s304 + $0x2] sm:$0x1]
        %v319 = vld [vmem:[%s309] sm:$0x1]
        %v320 = vld [vmem:[%s309 + $0x2] sm:$0x1]
        %v321 = vld [vmem:[%s304] sm:$0x3]
        %v322 = vld [vmem:[%s304 + $0x2] sm:$0x3]
        %s323 = scalar_lea.vmem %s294, 2
        %v324 = vld [vmem:[%s323] sm:$0x1]
        %v325 = vld [vmem:[%s323 + $0x2] sm:$0x1]
        %s326 = scalar_lea.vmem %s299, 2
        %v327 = vld [vmem:[%s326] sm:$0x1]
        %v328 = vld [vmem:[%s326 + $0x2] sm:$0x1]
        %v329 = vld [vmem:[%s323] sm:$0x3]
        %v330 = vld [vmem:[%s323 + $0x2] sm:$0x3]
        %332 = vst [vmem:[#allocation1] ss:$4 sm:$0xff] %v313
        %v333 = vld.sshfl [vmem:[#allocation1] sm:$0xff pattern:$0x73625140]
        %s336 = scalar_lea.vmem [#allocation1], 32
        %337 = vst [vmem:[%s336] ss:$4 sm:$0xff] %v314
        %v338 = vld.sshfl [vmem:[#allocation1 + $0x20] sm:$0xff pattern:$0x73625140]
        %340 = vrot.lane.b32.xlu0 %v333, 32
        %v341 = vpop.permute.xlu0 %340
        %342 = vrot.lane.b32.xlu0 %v338, 32
        %v343 = vpop.permute.xlu0 %342
        %345 = vst [vmem:[#allocation1] ss:$4 sm:$0xff] %v315
        %v346 = vld.sshfl [vmem:[#allocation1] sm:$0xff pattern:$0x73625140]
        %s348 = scalar_lea.vmem [#allocation1], 32
        %349 = vst [vmem:[%s348] ss:$4 sm:$0xff] %v316
        %v350 = vld.sshfl [vmem:[#allocation1 + $0x20] sm:$0xff pattern:$0x73625140]
        %v351 = vshrl.u32 %v346, 16
        %v353 = vshll.u32 %v346, 16
        %v355 = vrot.slane %v353, 1
        %v356 = vor.u32 %v351, %v355
        %v357 = vshrl.u32 %v350, 16
        %v359 = vshll.u32 %v350, 16
        %v361 = vrot.slane %v359, 1
        %v362 = vor.u32 %v357, %v361
        %363 = vrot.lane.b32.xlu0 %v356, 64
        %v364 = vpop.permute.xlu0 %363
        %365 = vrot.lane.b32.xlu0 %v362, 64
        %v366 = vpop.permute.xlu0 %365
        %368 = vst [vmem:[#allocation1] ss:$4 sm:$0xff] %v317
        %v369 = vld.sshfl [vmem:[#allocation1] sm:$0xff pattern:$0x73625140]
        %s372 = scalar_lea.vmem [#allocation1], 32
        %373 = vst [vmem:[%s372] ss:$4 sm:$0xff] %v318
        %v374 = vld.sshfl [vmem:[#allocation1 + $0x20] sm:$0xff pattern:$0x73625140]
        %376 = vrot.lane.b32.xlu0 %v369, 96
        %v377 = vpop.permute.xlu0 %376
        %378 = vrot.lane.b32.xlu0 %v374, 96
        %v379 = vpop.permute.xlu0 %378
        %381 = vst [vmem:[#allocation1] ss:$4 sm:$0xff] %v321
        %v382 = vld.sshfl [vmem:[#allocation1] sm:$0xff pattern:$0x73625140]
        %s384 = scalar_lea.vmem [#allocation1], 32
        %385 = vst [vmem:[%s384] ss:$4 sm:$0xff] %v322
        %v386 = vld.sshfl [vmem:[#allocation1 + $0x20] sm:$0xff pattern:$0x73625140]
        %v387 = vshrl.u32 %v382, 16
        %v389 = vshll.u32 %v382, 16
        %v391 = vrot.slane %v389, 1
        %v392 = vor.u32 %v387, %v391
        %v393 = vshrl.u32 %v386, 16
        %v395 = vshll.u32 %v386, 16
        %v397 = vrot.slane %v395, 1
        %v398 = vor.u32 %v393, %v397
        %399 = vrot.lane.b32.xlu0 %v392, 32
        %v400 = vpop.permute.xlu0 %399
        %401 = vrot.lane.b32.xlu0 %v398, 32
        %v402 = vpop.permute.xlu0 %401
        %404 = vst [vmem:[#allocation1] ss:$4 sm:$0xff] %v324
        %v405 = vld.sshfl [vmem:[#allocation1] sm:$0xff pattern:$0x73625140]
        %s408 = scalar_lea.vmem [#allocation1], 32
        %409 = vst [vmem:[%s408] ss:$4 sm:$0xff] %v325
        %v410 = vld.sshfl [vmem:[#allocation1 + $0x20] sm:$0xff pattern:$0x73625140]
        %412 = vrot.lane.b32.xlu0 %v405, 64
        %v413 = vpop.permute.xlu0 %412
        %414 = vrot.lane.b32.xlu0 %v410, 64
        %v415 = vpop.permute.xlu0 %414
        %417 = vst [vmem:[#allocation1] ss:$4 sm:$0xff] %v327
        %v418 = vld.sshfl [vmem:[#allocation1] sm:$0xff pattern:$0x73625140]
        %s421 = scalar_lea.vmem [#allocation1], 32
        %422 = vst [vmem:[%s421] ss:$4 sm:$0xff] %v328
        %v423 = vld.sshfl [vmem:[#allocation1 + $0x20] sm:$0xff pattern:$0x73625140]
        %425 = vrot.lane.b32.xlu0 %v418, 96
        %v426 = vpop.permute.xlu0 %425
        %427 = vrot.lane.b32.xlu0 %v423, 96
        %v428 = vpop.permute.xlu0 %427
        %430 = vst [vmem:[#allocation1] ss:$4 sm:$0xff] %v329
        %v431 = vld.sshfl [vmem:[#allocation1] sm:$0xff pattern:$0x73625140]
        %s433 = scalar_lea.vmem [#allocation1], 32
        %434 = vst [vmem:[%s433] ss:$4 sm:$0xff] %v330
        %v435 = vld.sshfl [vmem:[#allocation1 + $0x20] sm:$0xff pattern:$0x73625140]
        %v436 = vshrl.u32 %v431, 16
        %v438 = vshll.u32 %v431, 16
        %v440 = vrot.slane %v438, 1
        %v441 = vor.u32 %v436, %v440
        %v442 = vshrl.u32 %v435, 16
        %v444 = vshll.u32 %v435, 16
        %v446 = vrot.slane %v444, 1
        %v447 = vor.u32 %v442, %v446
        %vm448 = vcmask 261120
        %v451 = vsel %vm448, %v311, %v341
        %v454 = vsel %vm448, %v312, %v343
        %vm455 = vcmask 523264
        %v457 = vsel %vm455, %v451, %v364
        %v459 = vsel %vm455, %v454, %v366
        %vm460 = vcmask 785408
        %v462 = vsel %vm460, %v457, %v377
        %v464 = vsel %vm460, %v459, %v379
        %v467 = vsel %vm448, %v319, %v400
        %v470 = vsel %vm448, %v320, %v402
        %v472 = vsel %vm455, %v467, %v413
        %v474 = vsel %vm455, %v470, %v415
        %v476 = vsel %vm460, %v472, %v426
        %v478 = vsel %vm460, %v474, %v428
        %v481 = vrot.slane %v476, 7
        %v482 = vrot.slane %v441, 6
        %v483 = vrot.slane %v478, 7
        %v484 = vrot.slane %v447, 6
        %vm485 = vcmask 1040384
        %v487 = vsel %vm485, %v462, %v481
        %vm488 = vcmask 1041408
        %v490 = vsel %vm488, %v487, %v482
        %v492 = vsel %vm485, %v464, %v483
        %v494 = vsel %vm488, %v492, %v484
        %v495 = vld [vmem:[%s4] sm:$0xf]
        %v496 = vld [vmem:[%s4 + $0x4] sm:$0xf]
        %v497 = vld [vmem:[%s4 + $0x8] sm:$0xf]
        %v498 = vld [vmem:[%s4 + $0xc] sm:$0xf]
        %v499 = vld [vmem:[%s4 + $0x10] sm:$0xf]
        %v500 = vld [vmem:[%s4 + $0x14] sm:$0xf]
        %v501 = vld [vmem:[%s4 + $0x18] sm:$0xf]
        %v502 = vld [vmem:[%s4 + $0x1c] sm:$0xf]
        %v503 = vld [vmem:[%s4 + $0x20] sm:$0xf]
        %v504 = vld [vmem:[%s4 + $0x24] sm:$0xf]
        %v505 = vld [vmem:[%s4 + $0x28] sm:$0xf]
        %v506 = vld [vmem:[%s4 + $0x2c] sm:$0xf]
        %v507 = vld [vmem:[%s4 + $0x30] sm:$0xf]
        %v508 = vld [vmem:[%s4 + $0x34] sm:$0xf]
        %v509 = vld [vmem:[%s4 + $0x38] sm:$0xf]
        %v510 = vld [vmem:[%s4 + $0x3c] sm:$0xf]
        %v511 = vld [vmem:[%s4 + $0x40] sm:$0xf]
        %v512 = vld [vmem:[%s4 + $0x44] sm:$0xf]
        %v513 = vld [vmem:[%s4 + $0x48] sm:$0xf]
        %v514 = vld [vmem:[%s4 + $0x4c] sm:$0xf]
        %v515 = vld [vmem:[%s4 + $0x50] sm:$0xf]
        %v516 = vld [vmem:[%s4 + $0x54] sm:$0xf]
        %v517 = vld [vmem:[%s4 + $0x58] sm:$0xf]
        %v518 = vld [vmem:[%s4 + $0x5c] sm:$0xf]
        %v519 = vld [vmem:[%s4 + $0x60] sm:$0xf]
        %v520 = vld [vmem:[%s4 + $0x64] sm:$0xf]
        %v521 = vld [vmem:[%s4 + $0x68] sm:$0xf]
        %v522 = vld [vmem:[%s4 + $0x6c] sm:$0xf]
        %v523 = vld [vmem:[%s4 + $0x70] sm:$0xf]
        %v524 = vld [vmem:[%s4 + $0x74] sm:$0xf]
        %v525 = vld [vmem:[%s4 + $0x78] sm:$0xf]
        %v526 = vld [vmem:[%s4 + $0x7c] sm:$0xf]
        %v527 = vld [vmem:[%s4 + $0x80] sm:$0xf]
        %v528 = vld [vmem:[%s4 + $0x84] sm:$0xf]
        %v529 = vld [vmem:[%s4 + $0x88] sm:$0xf]
        %v530 = vld [vmem:[%s4 + $0x8c] sm:$0xf]
        %v531 = vld [vmem:[%s5] sm:$0x1]
        %v533 = vperm.slane %v531, 0
        %535 = vst [vmem:[#allocation1] ss:$9 sm:$0xff] %v490
        %s536 = scalar_lea.vmem [#allocation1], 1
        %537 = vst [vmem:[%s536] ss:$9 sm:$0xff] %v494
        %v538 = vld [vmem:[#allocation1] sm:$0xff]
        %v539 = vld [vmem:[#allocation1 + $0x9] sm:$0xff]
        %v540 = vld [vmem:[#allocation1 + $0x12] sm:$0xff]
        %v579 = vunpack.c.l.b16 %v495
        %v580 = vunpack.c.l.b16 %v496
        %v581 = vunpack.c.l.b16 %v497
        %v582 = vunpack.c.l.b16 %v498
        %v583 = vunpack.c.l.b16 %v499
        %v584 = vunpack.c.l.b16 %v500
        %v585 = vunpack.c.l.b16 %v501
        %v586 = vunpack.c.l.b16 %v502
        %v587 = vunpack.c.l.b16 %v503
        %v588 = vunpack.c.l.b16 %v504
        %v589 = vunpack.c.l.b16 %v505
        %v590 = vunpack.c.l.b16 %v506
        %v591 = vunpack.c.l.b16 %v507
        %v592 = vunpack.c.l.b16 %v508
        %v593 = vunpack.c.l.b16 %v509
        %v594 = vunpack.c.l.b16 %v510
        %v595 = vunpack.c.l.b16 %v511
        %v596 = vunpack.c.l.b16 %v512
        %v597 = vunpack.c.l.b16 %v513
        %v598 = vunpack.c.l.b16 %v514
        %v599 = vunpack.c.l.b16 %v515
        %v600 = vunpack.c.l.b16 %v516
        %v601 = vunpack.c.l.b16 %v517
        %v602 = vunpack.c.l.b16 %v518
        %v603 = vunpack.c.l.b16 %v519
        %v604 = vunpack.c.l.b16 %v520
        %v605 = vunpack.c.l.b16 %v521
        %v606 = vunpack.c.l.b16 %v522
        %v607 = vunpack.c.l.b16 %v523
        %v608 = vunpack.c.l.b16 %v524
        %v609 = vunpack.c.l.b16 %v525
        %v610 = vunpack.c.l.b16 %v526
        %v611 = vunpack.c.l.b16 %v527
        %v612 = vunpack.c.l.b16 %v528
        %v613 = vunpack.c.l.b16 %v529
        %v614 = vunpack.c.l.b16 %v530
        %v615 = vpack.c.b16 %v580, %v579
        %v616 = vpack.c.b16 %v582, %v581
        %v617 = vpack.c.b16 %v584, %v583
        %v618 = vpack.c.b16 %v586, %v585
        %v619 = vpack.c.b16 %v588, %v587
        %v620 = vpack.c.b16 %v590, %v589
        %v621 = vpack.c.b16 %v592, %v591
        %v622 = vpack.c.b16 %v594, %v593
        %v623 = vpack.c.b16 %v596, %v595
        %v624 = vpack.c.b16 %v598, %v597
        %v625 = vpack.c.b16 %v600, %v599
        %v626 = vpack.c.b16 %v602, %v601
        %v627 = vpack.c.b16 %v604, %v603
        %v628 = vpack.c.b16 %v606, %v605
        %v629 = vpack.c.b16 %v608, %v607
        %v630 = vpack.c.b16 %v610, %v609
        %v631 = vpack.c.b16 %v612, %v611
        %v632 = vpack.c.b16 %v614, %v613
        %v651 = vsel %vm448, %v540, 0
        %653 = vmatpush.bf16.msra.mxu0 %v622
        %654 = vmatpush.bf16.msra.mxu0 %v621
        %655 = vmatpush.bf16.msra.mxu0 %v620
        %656 = vmatpush.bf16.msra.mxu0 %v619
        %657 = vmatpush.bf16.msra.mxu0 %v618
        %658 = vmatpush.bf16.msra.mxu0 %v617
        %659 = vmatpush.bf16.msra.mxu0 %v616
        %660 = vmatpush.bf16.msra.mxu0 %v615
        %661 = vmatmul.bf16.gmra.mxu0 %v538
        %v662 = vpop.f32.mrf.mxu0
        %v663 = vadd.f32 %v533, %v662
        %v664 = vpop.f32.mrf.mxu0
        %665 = vdwg.mxu0
        %666 = vmatpush.bf16.msra.mxu0 %v630
        %667 = vmatpush.bf16.msra.mxu0 %v629
        %668 = vmatpush.bf16.msra.mxu0 %v628
        %669 = vmatpush.bf16.msra.mxu0 %v627
        %670 = vmatpush.bf16.msra.mxu0 %v626
        %671 = vmatpush.bf16.msra.mxu0 %v625
        %672 = vmatpush.bf16.msra.mxu0 %v624
        %673 = vmatpush.bf16.msra.mxu0 %v623
        %674 = vmatmul.bf16.gmra.mxu0 %v539
        %v675 = vpop.f32.mrf.mxu0
        %v676 = vadd.f32 %v663, %v675
        %v677 = vpop.f32.mrf.mxu0
        %678 = vdwg.mxu0
        %679 = vmatpush.bf16.msra.mxu0 0
        %680 = vmatpush.bf16.msra.mxu0 0
        %681 = vmatpush.bf16.msra.mxu0 0
        %682 = vmatpush.bf16.msra.mxu0 0
        %683 = vmatpush.bf16.msra.mxu0 0
        %684 = vmatpush.bf16.msra.mxu0 0
        %685 = vmatpush.bf16.msra.mxu0 %v632
        %686 = vmatpush.bf16.msra.mxu0 %v631
        %687 = vmatmul.bf16.gmra.mxu0 %v651
        %v688 = vpop.f32.mrf.mxu0
        %v689 = vadd.f32 %v676, %v688
        %v690 = vpop.f32.mrf.mxu0
        %691 = vdwg.mxu0
        %v692 = vmax.f32 %v689, 0.0
        %v694 = vrot.slane %v692, 2
        %vm696 = vcmask 517120
        %697 = vst.msk [vmem:[%s289] sm:$0x3] %vm696, %v692
        %698 = vst.msk [vmem:[%s289 + $0x2] sm:$0x3] %vm696, %v694
        %s699 = sand.u32 %s174, 1
        %s700 = scalar_lea.sflag [#allocation3], %s699
        %s701 = sand.u32 %s174, 1
        %s702 = smul.addr %s701, 4
        %s703 = scalar_lea.vmem [#allocation2], %s702
        // Predicated region
        $region45: #{fwd.5} parent=43 // pred_check
          %p704 = pneg %p184
        $region46: #{fwd.5} parent=43 // pred_check_branch
          %706 = sbr.rel (%p704) target = $region48
        $region47: #{fwd.5} parent=43 // pred_region
          %708 = vsyncadd %s700, 0
          %s709 = smul.addr %s20, 2
          %s710 = smul.addr %s709, 2
          %s711 = scalar_lea.hbm %s6, %s710
          %s712 = sshll.u32 %s703, 4
          %s713 = int_to_ptr.vmem [resolvable:$true] %s712
          %s714 = sshll.u32 %s711, 4
          %s715 = int_to_ptr.hbm [resolvable:$true] %s714
          %720 = dma.vmem_to_hbm [thread:$0]  %s713, 64, %s715, %s700, 32, 32, 2
        $region48: #{fwd.5} parent=43 // pred_fallthru
          _
      $region44: #{fwd.5} parent=5 // pred_fallthru
        _
      %p721 = scmp.le.s32.totalorder 2, %s15
      // Predicated region
      $region49: #{fwd.5} parent=5 // pred_check
        %p722 = pneg %p721
      $region50: #{fwd.5} parent=5 // pred_check_branch
        %724 = sbr.rel (%p722) target = $region52
      $region51: #{fwd.5} parent=5 // pred_region
        %s725 = ssub.s32 %s15, 2
        // Predicated region
        $region53: #{fwd.5} parent=51 // pred_check
          %p726 = pneg %p190
        $region54: #{fwd.5} parent=51 // pred_check_branch
          %728 = sbr.rel (%p726) target = $region56
        $region55: #{fwd.5} parent=51 // pred_region
          %s729 = sand.u32 %s175, 1
          %s730 = scalar_lea.sflag [#allocation3], %s729
          %s731 = sand.u32 %s175, 1
          %s732 = smul.addr %s731, 4
          %s733 = scalar_lea.vmem [#allocation2], %s732
          %735 = dma.done %s730, 64
        $region56: #{fwd.5} parent=51 // pred_fallthru
          _
      $region52: #{fwd.5} parent=5 // pred_fallthru
        _
    $region6: #{fwd.5} parent=1 // loop_footer
      %s19 = sadd.s32 1, %s15
    $region7: #{fwd.5} parent=1 // loop_footer_branch
      %14 = sbr.rel target = $region3
    $region8: #{fwd.5} parent=1 // loop_exit
      _
    %736 = vsyncpa [#allocation3], 1
    %s737 = scalar_lea.sflag [#allocation3], 1
    %738 = vsyncpa %s737, 1

</llo_original>
